<compile_context>
chip_gen: v5e
topology: v5e:2x2
jax: 0.10.0
libtpu: 0.0.40
codegen_flags: <defaults>
</compile_context>

<pallas_src>
import functools

import jax
import jax.numpy as jnp
from jax.experimental import pallas as pl
from jax.experimental.pallas import tpu as pltpu


def _half_tile(lh):
    """Lane-tile size over half-resolution positions (multiple of 128, <=2048)."""
    t = 128
    while lh // t > 8 and t < 2048:
        t *= 2
    return t


_VMEM_LIMIT = 48 * 1024 * 1024   # fits v7x (64 MiB/TC), ample headroom on v5e/v6e


# ---------------------------------------------------------------------------
# Fused encoder kernel: conv1 + conv2 + maxpool + fc.   grid = (nT, B)
# ---------------------------------------------------------------------------
def _encoder_kernel(xe_ref, xo_ref, w1_ref, b1_ref, w2_ref, b2_ref,
                    wf_ref, bf_ref, o_ref, *, T, Lh_real, latent):
    t = pl.program_id(0)
    b = pl.program_id(1)

    @pl.when((t == 0) & (b == 0))
    def _init():
        o_ref[...] = jnp.broadcast_to(bf_ref[...], o_ref.shape)

    # per-tile haloed input slabs (even / odd phases), pre-sliced in encode()
    xe = xe_ref[0, 0]                                 # (1, T+4)
    xo = xo_ref[0, 0]                                 # (1, T+4)

    # --- Conv1d(1,32,3,p1)+ReLU, polyphase, VPU broadcast-MACs (Cin=1) -------
    w10 = w1_ref[:, 0:1]
    w11 = w1_ref[:, 1:2]
    w12 = w1_ref[:, 2:3]                              # (32, 1) taps
    b1 = b1_ref[...]                                  # (32, 1)
    xo_m1 = xo[:, 0:T + 2]
    xe_0 = xe[:, 1:T + 3]
    xo_0 = xo[:, 1:T + 3]
    xe_p1 = xe[:, 2:T + 4]
    h1e = jnp.maximum(w10 * xo_m1 + w11 * xe_0 + w12 * xo_0 + b1, 0.0)   # (32, T+2)
    h1o = jnp.maximum(w10 * xe_0 + w11 * xo_0 + w12 * xe_p1 + b1, 0.0)   # (32, T+2)

    # zero outside the real sequence so conv2's "same" padding stays exact
    u = jax.lax.broadcasted_iota(jnp.int32, h1e.shape, 1)
    jh = t * T - 1 + u
    valid = (jh >= 0) & (jh < Lh_real)
    h1e = jnp.where(valid, h1e, 0.0)
    h1o = jnp.where(valid, h1o, 0.0)

    # --- Conv1d(32,32,3,p1)+ReLU: three accumulating MXU dots per parity -----
    W0 = w2_ref[0]
    W1 = w2_ref[1]
    W2 = w2_ref[2]                                    # (32, 32) per tap
    b2 = b2_ref[...]                                  # (32, 1)
    h2e = jnp.dot(W0, h1o[:, 0:T], preferred_element_type=jnp.float32)
    h2e = h2e + jnp.dot(W1, h1e[:, 1:T + 1], preferred_element_type=jnp.float32)
    h2e = h2e + jnp.dot(W2, h1o[:, 1:T + 1], preferred_element_type=jnp.float32)
    h2e = jnp.maximum(h2e + b2, 0.0)
    h2o = jnp.dot(W0, h1e[:, 1:T + 1], preferred_element_type=jnp.float32)
    h2o = h2o + jnp.dot(W1, h1o[:, 1:T + 1], preferred_element_type=jnp.float32)
    h2o = h2o + jnp.dot(W2, h1e[:, 2:T + 2], preferred_element_type=jnp.float32)
    h2o = jnp.maximum(h2o + b2, 0.0)

    # --- MaxPool1d(2,2): pooling pairs are exactly (even, odd) columns -------
    pooled = jnp.maximum(h2e, h2o)                    # (32, T)

    # --- flatten + Linear(F, latent): per-latent reduce, no big temp ---------
    parts = []
    for l in range(latent):                           # latent is tiny: unrolled
        wl = wf_ref[l].astype(jnp.float32)            # (32, T) bf16 -> f32
        parts.append(jnp.sum(wl * pooled, axis=1, keepdims=True))   # (32, 1)
    contrib = jnp.sum(jnp.concatenate(parts, axis=1), axis=0, keepdims=True)  # (1, latent)
    o_ref[pl.ds(b, 1), :] = o_ref[pl.ds(b, 1), :] + contrib


# ---------------------------------------------------------------------------
# Fused decoder kernel: (fc folded into deconv1) + 2x upsample + deconv2.
# grid = (nT, B)
# ---------------------------------------------------------------------------
def _decoder_kernel(z_ref, a_ref, c_ref, wfin_ref, bfin_ref, o_ref, *, T, latent):
    b = pl.program_id(1)

    # r_pre = c_t + sum_d z[d] * A_t[d]   (Linear folded into ConvT1d(32,16))
    z_b = z_ref[pl.ds(b, 1), :]                       # (1, latent)
    r = c_ref[0]                                      # (16, T+2) f32
    for d in range(latent):                           # latent is tiny: unrolled
        r = r + z_b[:, d:d + 1] * a_ref[0, d].astype(jnp.float32)
    r = jnp.maximum(r, 0.0)                           # ReLU; ==0 outside real seq
    # (zero-padded A/c slabs make r vanish for j<0, j>=Lh: no masking needed)

    # --- 2x nearest upsample + ConvTranspose1d(16,1,3,p1) + sigmoid ----------
    # collapses into two polyphase 3-tap filters (Cout=1 -> VPU + sublane sum)
    r_m1 = r[:, 0:T]
    r_0 = r[:, 1:T + 1]
    r_p1 = r[:, 2:T + 2]
    w0 = wfin_ref[:, 0:1]
    w12 = wfin_ref[:, 1:2]
    w01 = wfin_ref[:, 2:3]
    w2 = wfin_ref[:, 3:4]
    ye = jax.nn.sigmoid(jnp.sum(w0 * r_m1 + w12 * r_0, axis=0, keepdims=True)
                        + bfin_ref[...])              # (1, T) even outputs
    yo = jax.nn.sigmoid(jnp.sum(w01 * r_0 + w2 * r_p1, axis=0, keepdims=True)
                        + bfin_ref[...])              # (1, T) odd outputs
    o_ref[0, 0:1, :] = ye
    o_ref[0, 1:2, :] = yo


# ---------------------------------------------------------------------------
# Model
# ---------------------------------------------------------------------------
class HybridGenCoderPallas:
    def __init__(self, input_length=128, latent_dim=8, key=jax.random.PRNGKey(0)):
        self.latent = latent_dim
        self.L = input_length * 5            # encoder input length == decoder output length
        assert self.L % 2 == 0, "input_length*5 must be even (MaxPool1d(2,2))"
        self.Lh = self.L // 2                # after MaxPool / before 2x upsample
        self.C = 32
        self.F = self.C * self.Lh            # flattened size of both Linear layers
        self.T = _half_tile(self.Lh)         # lane tile over half-resolution positions
        self.nT = pl.cdiv(self.Lh, self.T)
        self.Lh_pad = self.nT * self.T

        ks = jax.random.split(key, 13)
        r = lambda k, shape, s=0.1: (s * jax.random.normal(k, shape)).astype(jnp.float32)

        # raw parameters (PyTorch layouts), kept for the pure-JAX reference
        self.w_conv1 = r(ks[0], (32, 1, 3));            self.b_conv1 = r(ks[1], (32,))
        self.w_conv2 = r(ks[2], (32, 32, 3));           self.b_conv2 = r(ks[3], (32,))
        self.w_fc_enc = r(ks[4], (latent_dim, self.F)); self.b_fc_enc = r(ks[5], (latent_dim,))
        self.q_params = jax.random.normal(ks[6], (latent_dim,)).astype(jnp.float32)
        self.w_fc_dec = r(ks[7], (self.F, latent_dim)); self.b_fc_dec = r(ks[8], (self.F,))
        self.w_dc1 = r(ks[9], (32, 16, 3));             self.b_dc1 = r(ks[10], (16,))
        self.w_dc2 = r(ks[11], (16, 1, 3));             self.b_dc2 = r(ks[12], (1,))

        T, nT, Lh, Lh_pad = self.T, self.nT, self.Lh, self.Lh_pad

        # ------------------- kernel-ready encoder layouts -------------------
        self._w1 = self.w_conv1[:, 0, :]                 # (32, 3)
        self._b1 = self.b_conv1[:, None]                 # (32, 1)
        self._w2t = jnp.transpose(self.w_conv2, (2, 0, 1))  # (3, 32, 32) per-tap mats
        self._b2 = self.b_conv2[:, None]                 # (32, 1)
        wf3 = self.w_fc_enc.reshape(latent_dim, self.C, Lh)
        self._wf_enc = jnp.pad(wf3, ((0, 0), (0, 0), (0, Lh_pad - Lh))
                               ).astype(jnp.bfloat16)    # big FC weight -> bf16
        self._bf_enc = self.b_fc_enc[None, :]            # (1, latent)

        # ------------------- kernel-ready decoder layouts -------------------
        # Fold Linear(latent,F) into ConvTranspose1d(32,16,3,p1):
        #   r_pre[o, j] = c[o, j] + sum_d z[d] * A[d, o, j]
        # ConvTranspose as a conv with swapped-in/out, tap-flipped weights.
        weq1 = jnp.flip(jnp.transpose(self.w_dc1, (1, 0, 2)), axis=2)   # (16, 32, 3)
        Wg = jnp.transpose(self.w_fc_dec.reshape(self.C, Lh, latent_dim),
                           (2, 0, 1))                    # (latent, 32, Lh)
        bg = self.b_fc_dec.reshape(self.C, Lh)           # (32, Lh)
        Wg_pad = jnp.pad(Wg, ((0, 0), (0, 0), (1, 1)))
        bg_pad = jnp.pad(bg, ((0, 0), (1, 1)))
        A_full = jnp.zeros((latent_dim, 16, Lh), jnp.float32)
        c_full = jnp.broadcast_to(self.b_dc1[:, None], (16, Lh)).astype(jnp.float32)
        for k in range(3):
            A_full = A_full + jnp.einsum('oc,dcj->doj', weq1[:, :, k],
                                         Wg_pad[:, :, k:k + Lh])
            c_full = c_full + jnp.einsum('oc,cj->oj', weq1[:, :, k],
                                         bg_pad[:, k:k + Lh])
        # pad with zeros: 1-col front halo + back pad; r==0 outside real range
        pad_back = Lh_pad + 1 - Lh
        A_ext = jnp.pad(A_full, ((0, 0), (0, 0), (1, pad_back)))  # (latent,16,Lh_pad+2)
        c_ext = jnp.pad(c_full, ((0, 0), (1, pad_back)))          # (16, Lh_pad+2)
        # per-tile slabs with a 1-col halo each side (width T+2; the (8,128)
        # lane padding of the halo is a small known overhead, accepted here).
        self._A_tiles = jnp.stack(
            [A_ext[:, :, i * T:i * T + T + 2] for i in range(nT)]).astype(jnp.bfloat16)
        self._c_tiles = jnp.stack([c_ext[:, i * T:i * T + T + 2] for i in range(nT)])

        # final ConvTranspose1d(16,1,3,p1) after 2x nearest upsample:
        # polyphase taps  y[2j]   = sigmoid(sum_c t0*r[j-1] + (t1+t2)*r[j] + b)
        #                 y[2j+1] = sigmoid(sum_c (t0+t1)*r[j] + t2*r[j+1] + b)
        weq2 = jnp.flip(jnp.transpose(self.w_dc2, (1, 0, 2)), axis=2)   # (1, 16, 3)
        t0, t1, t2 = weq2[0, :, 0], weq2[0, :, 1], weq2[0, :, 2]
        self._wfin = jnp.stack([t0, t1 + t2, t0 + t1, t2], axis=1)      # (16, 4)
        self._bfin = self.b_dc2.reshape(1, 1)

    # ----------------------------- encoder ----------------------------------
    def encode(self, x):
        """x: (B, 1, L) -> (B, latent)."""
        B = x.shape[0]
        T, nT, Lh, Lh_pad, latent = self.T, self.nT, self.Lh, self.Lh_pad, self.latent
        pad = ((0, 0), (0, 0), (2, Lh_pad + 2 - Lh))
        xe_full = jnp.pad(x[:, :, 0::2], pad)            # (B, 1, Lh_pad+4) even phase
        xo_full = jnp.pad(x[:, :, 1::2], pad)            # (B, 1, Lh_pad+4) odd  phase
        # pre-sliced per-tile haloed input slabs -> per-step input DMA is tiny
        xe_t = jnp.stack([xe_full[:, :, i * T:i * T + T + 4] for i in range(nT)], axis=1)
        xo_t = jnp.stack([xo_full[:, :, i * T:i * T + T + 4] for i in range(nT)], axis=1)

        kernel = functools.partial(_encoder_kernel, T=T, Lh_real=Lh, latent=latent)
        return pl.pallas_call(
            kernel,
            out_shape=jax.ShapeDtypeStruct((B, latent), jnp.float32),
            grid=(nT, B),
            in_specs=[
                pl.BlockSpec((1, 1, 1, T + 4), lambda t, b: (b, t, 0, 0)),
                pl.BlockSpec((1, 1, 1, T + 4), lambda t, b: (b, t, 0, 0)),
                pl.BlockSpec((32, 3), lambda t, b: (0, 0)),
                pl.BlockSpec((32, 1), lambda t, b: (0, 0)),
                pl.BlockSpec((3, 32, 32), lambda t, b: (0, 0, 0)),
                pl.BlockSpec((32, 1), lambda t, b: (0, 0)),
                # big FC weight: index ignores b (inner axis) -> fetched once per t
                pl.BlockSpec((latent, 32, T), lambda t, b: (0, 0, t)),
                pl.BlockSpec((1, latent), lambda t, b: (0, 0)),
            ],
            out_specs=pl.BlockSpec((B, latent), lambda t, b: (0, 0)),
            compiler_params=pltpu.CompilerParams(
                dimension_semantics=("arbitrary", "arbitrary"),  # output accumulates
                vmem_limit_bytes=_VMEM_LIMIT),
        )(xe_t, xo_t, self._w1, self._b1, self._w2t, self._b2,
          self._wf_enc, self._bf_enc)

    # --------------------- quantum compressor (analytic) --------------------
    def quantum_compress(self, encoded):
        # Exact expectations of the RY-chain + CNOT-ladder circuit:
        # <Z_i> = prod_{k<=i} cos(theta_k); as in torch, only the batch size of
        # `encoded` is used.  A handful of scalars -> plain JAX, not a kernel.
        q = jnp.cumprod(jnp.cos(self.q_params))
        return jnp.broadcast_to(q[None, :], (encoded.shape[0], self.latent))

    # ----------------------------- decoder ----------------------------------
    def decode(self, z):
        """z: (B, latent) -> (B, 1, L)."""
        B = z.shape[0]
        T, nT, Lh, Lh_pad, latent = self.T, self.nT, self.Lh, self.Lh_pad, self.latent
        kernel = functools.partial(_decoder_kernel, T=T, latent=latent)
        out = pl.pallas_call(
            kernel,
            out_shape=jax.ShapeDtypeStruct((B, 2, Lh_pad), jnp.float32),
            grid=(nT, B),
            in_specs=[
                pl.BlockSpec((B, latent), lambda t, b: (0, 0)),               # z
                # folded-weight slabs: index ignores b -> fetched once per t
                pl.BlockSpec((1, latent, 16, T + 2), lambda t, b: (t, 0, 0, 0)),
                pl.BlockSpec((1, 16, T + 2), lambda t, b: (t, 0, 0)),
                pl.BlockSpec((16, 4), lambda t, b: (0, 0)),
                pl.BlockSpec((1, 1), lambda t, b: (0, 0)),
            ],
            out_specs=pl.BlockSpec((1, 2, T), lambda t, b: (b, 0, t)),
            compiler_params=pltpu.CompilerParams(
                dimension_semantics=("parallel", "parallel"),  # t shardable on v7x
                vmem_limit_bytes=_VMEM_LIMIT),
        )(z, self._A_tiles, self._c_tiles, self._wfin, self._bfin)
        y = out[:, :, :Lh]                                   # drop lane padding
        y = jnp.transpose(y, (0, 2, 1)).reshape(B, self.L)   # interleave even/odd
        return y[:, None, :]                                 # (B, 1, L)

    def __call__(self, x):
        encoded = self.encode(x)
        qz = self.quantum_compress(encoded)
        return self.decode(qz)


# ---------------------------------------------------------------------------
# Pure-JAX reference (numerical sanity check)
# ---------------------------------------------------------------------------
def _ref_conv1d(x, w, b):
    B, _, L = x.shape
    xp = jnp.pad(x, ((0, 0), (0, 0), (1, 1)))
    y = jnp.broadcast_to(b[None, :, None], (B, w.shape[0], L)).astype(jnp.float32)
    for k in range(3):
        y = y + jnp.einsum("oc,bcl->bol", w[:, :, k], xp[:, :, k:k + L])
    return y


def _ref_deconv1d(x, w, b):
    B, _, L = x.shape
    Cout = w.shape[1]
    xp = jnp.pad(x, ((0, 0), (0, 0), (1, 1)))
    y = jnp.broadcast_to(b[None, :, None], (B, Cout, L)).astype(jnp.float32)
    for k in range(3):
        y = y + jnp.einsum("co,bcl->bol", w[:, :, k], xp[:, :, 2 - k:2 - k + L])
    return y


def _ref_forward(m, x):
    h = jax.nn.relu(_ref_conv1d(x, m.w_conv1, m.b_conv1))
    h = jax.nn.relu(_ref_conv1d(h, m.w_conv2, m.b_conv2))
    B, C, L = h.shape
    p = h.reshape(B, C, L // 2, 2).max(axis=-1)
    encoded = p.reshape(B, -1) @ m.w_fc_enc.T + m.b_fc_enc
    q = jnp.cumprod(jnp.cos(m.q_params))
    qz = jnp.broadcast_to(q[None, :], (B, m.latent))
    z = qz @ m.w_fc_dec.T + m.b_fc_dec
    z = z.reshape(B, m.C, m.Lh)
    z = jax.nn.relu(_ref_deconv1d(z, m.w_dc1, m.b_dc1))
    z = jnp.repeat(z, 2, axis=2)          # nearest 2x upsample (== hard-coded 35490)
    recon = jax.nn.sigmoid(_ref_deconv1d(z, m.w_dc2, m.b_dc2))
    return encoded, recon


if __name__ == "__main__":
    model = HybridGenCoderPallas(input_length=128, latent_dim=8,
                                 key=jax.random.PRNGKey(0))
    x = jax.random.normal(jax.random.PRNGKey(0), (2, 1, model.L), dtype=jnp.float32)

    encoded = model.encode(x)            # fused encoder kernel
    out = model(x)                       # full forward: encoder + quantum + decoder
    jax.block_until_ready((encoded, out))
    assert out.shape == (2, 1, model.L), out.shape

    ref_enc, ref_out = _ref_forward(model, x)
    # tolerances account for bf16 weight streaming vs the f32 reference
    assert float(jnp.max(jnp.abs(encoded - ref_enc))) < 5e-2, "encoder mismatch"
    assert float(jnp.max(jnp.abs(out - ref_out))) < 2e-2, "decoder mismatch"
    print("KERNEL_OK")
</pallas_src>

<mosaic_0001>
module attributes {stable_mosaic.version = 11 : i64} {
  func.func @_encoder_kernel(%arg0: i32, %arg1: i32, %arg2: memref<1x1x1x132xf32, #tpu.memory_space<vmem>>, %arg3: memref<1x1x1x132xf32, #tpu.memory_space<vmem>>, %arg4: memref<32x3xf32, #tpu.memory_space<vmem>>, %arg5: memref<32x1xf32, #tpu.memory_space<vmem>>, %arg6: memref<3x32x32xf32, #tpu.memory_space<vmem>>, %arg7: memref<32x1xf32, #tpu.memory_space<vmem>>, %arg8: memref<8x32x128xbf16, #tpu.memory_space<vmem>>, %arg9: memref<1x8xf32, #tpu.memory_space<vmem>>, %arg10: memref<2x8xf32, #tpu.memory_space<vmem>>) attributes {dimension_semantics = [#tpu.dimension_semantics<arbitrary>, #tpu.dimension_semantics<arbitrary>], iteration_bounds = array<i64: 3, 2>, scalar_prefetch = 0 : i64, scratch_operands = 0 : i64, tpu.core_type = #tpu.core_type<tc>, window_params = [{transform_indices = @transform_0, window_bounds = array<i64: 1, 1, 1, 132>}, {transform_indices = @transform_1, window_bounds = array<i64: 1, 1, 1, 132>}, {pipeline_mode = #tpu.pipeline_mode<synchronous>, transform_indices = @transform_2, window_bounds = array<i64: 32, 3>}, {pipeline_mode = #tpu.pipeline_mode<synchronous>, transform_indices = @transform_3, window_bounds = array<i64: 32, 1>}, {pipeline_mode = #tpu.pipeline_mode<synchronous>, transform_indices = @transform_4, window_bounds = array<i64: 3, 32, 32>}, {pipeline_mode = #tpu.pipeline_mode<synchronous>, transform_indices = @transform_5, window_bounds = array<i64: 32, 1>}, {transform_indices = @transform_6, window_bounds = array<i64: 8, 32, 128>}, {pipeline_mode = #tpu.pipeline_mode<synchronous>, transform_indices = @transform_7, window_bounds = array<i64: 1, 8>}, {pipeline_mode = #tpu.pipeline_mode<synchronous>, transform_indices = @transform_8, window_bounds = array<i64: 2, 8>}]} {
    %c0_i32 = arith.constant 0 : i32
    %0 = arith.cmpi eq, %arg0, %c0_i32 : i32
    %c0_i32_0 = arith.constant 0 : i32
    %1 = arith.cmpi eq, %arg1, %c0_i32_0 : i32
    %2 = arith.andi %0, %1 : i1
    %3 = arith.extui %2 : i1 to i32
    %c0_i32_1 = arith.constant 0 : i32
    %4 = arith.cmpi ne, %3, %c0_i32_1 : i32
    scf.if %4 {
      %c0_68 = arith.constant 0 : index
      %c0_69 = arith.constant 0 : index
      %149 = vector.load %arg9[%c0_68, %c0_69] : memref<1x8xf32, #tpu.memory_space<vmem>>, vector<1x8xf32>
      %150 = vector.shape_cast %149 : vector<1x8xf32> to vector<1x8xf32>
      %151 = vector.broadcast %150 : vector<1x8xf32> to vector<2x8xf32>
      %c0_70 = arith.constant 0 : index
      %c0_71 = arith.constant 0 : index
      %152 = vector.load %arg10[%c0_70, %c0_71] : memref<2x8xf32, #tpu.memory_space<vmem>>, vector<2x8xf32>
      tpu.vector_store %arg10[%c0_70, %c0_71], %151 {strides = array<i32>} : memref<2x8xf32, #tpu.memory_space<vmem>>, vector<2x8xf32>,
    } else {
    }
    %c0 = arith.constant 0 : index
    %c0_2 = arith.constant 0 : index
    %c0_3 = arith.constant 0 : index
    %c0_4 = arith.constant 0 : index
    %5 = vector.load %arg2[%c0, %c0_2, %c0_3, %c0_4] : memref<1x1x1x132xf32, #tpu.memory_space<vmem>>, vector<1x1x1x132xf32>
    %6 = vector.shape_cast %5 : vector<1x1x1x132xf32> to vector<1x132xf32>
    %c0_5 = arith.constant 0 : index
    %c0_6 = arith.constant 0 : index
    %c0_7 = arith.constant 0 : index
    %c0_8 = arith.constant 0 : index
    %7 = vector.load %arg3[%c0_5, %c0_6, %c0_7, %c0_8] : memref<1x1x1x132xf32, #tpu.memory_space<vmem>>, vector<1x1x1x132xf32>
    %8 = vector.shape_cast %7 : vector<1x1x1x132xf32> to vector<1x132xf32>
    %c0_9 = arith.constant 0 : index
    %c0_10 = arith.constant 0 : index
    %9 = vector.load %arg4[%c0_9, %c0_10] : memref<32x3xf32, #tpu.memory_space<vmem>>, vector<32x1xf32>
    %c0_11 = arith.constant 0 : index
    %c1 = arith.constant 1 : index
    %10 = vector.load %arg4[%c0_11, %c1] : memref<32x3xf32, #tpu.memory_space<vmem>>, vector<32x1xf32>
    %c0_12 = arith.constant 0 : index
    %c2 = arith.constant 2 : index
    %11 = vector.load %arg4[%c0_12, %c2] : memref<32x3xf32, #tpu.memory_space<vmem>>, vector<32x1xf32>
    %c0_13 = arith.constant 0 : index
    %c0_14 = arith.constant 0 : index
    %12 = vector.load %arg5[%c0_13, %c0_14] : memref<32x1xf32, #tpu.memory_space<vmem>>, vector<32x1xf32>
    %13 = vector.extract_strided_slice %8 {offsets = [0, 0], sizes = [1, 130], strides = [1, 1]} : vector<1x132xf32> to vector<1x130xf32>
    %14 = vector.extract_strided_slice %6 {offsets = [0, 1], sizes = [1, 130], strides = [1, 1]} : vector<1x132xf32> to vector<1x130xf32>
    %15 = vector.extract_strided_slice %8 {offsets = [0, 1], sizes = [1, 130], strides = [1, 1]} : vector<1x132xf32> to vector<1x130xf32>
    %16 = vector.extract_strided_slice %6 {offsets = [0, 2], sizes = [1, 130], strides = [1, 1]} : vector<1x132xf32> to vector<1x130xf32>
    %17 = vector.broadcast %9 : vector<32x1xf32> to vector<32x130xf32>
    %18 = vector.broadcast %13 : vector<1x130xf32> to vector<32x130xf32>
    %19 = arith.mulf %17, %18 : vector<32x130xf32>
    %20 = vector.broadcast %10 : vector<32x1xf32> to vector<32x130xf32>
    %21 = vector.broadcast %14 : vector<1x130xf32> to vector<32x130xf32>
    %22 = arith.mulf %20, %21 : vector<32x130xf32>
    %23 = arith.addf %19, %22 : vector<32x130xf32>
    %24 = vector.broadcast %11 : vector<32x1xf32> to vector<32x130xf32>
    %25 = vector.broadcast %15 : vector<1x130xf32> to vector<32x130xf32>
    %26 = arith.mulf %24, %25 : vector<32x130xf32>
    %27 = arith.addf %23, %26 : vector<32x130xf32>
    %28 = vector.broadcast %12 : vector<32x1xf32> to vector<32x130xf32>
    %29 = arith.addf %27, %28 : vector<32x130xf32>
    %cst = arith.constant 0.000000e+00 : f32
    %30 = vector.broadcast %cst : f32 to vector<32x130xf32>
    %31 = arith.maximumf %29, %30 : vector<32x130xf32>
    %32 = vector.broadcast %9 : vector<32x1xf32> to vector<32x130xf32>
    %33 = vector.broadcast %14 : vector<1x130xf32> to vector<32x130xf32>
    %34 = arith.mulf %32, %33 : vector<32x130xf32>
    %35 = vector.broadcast %10 : vector<32x1xf32> to vector<32x130xf32>
    %36 = vector.broadcast %15 : vector<1x130xf32> to vector<32x130xf32>
    %37 = arith.mulf %35, %36 : vector<32x130xf32>
    %38 = arith.addf %34, %37 : vector<32x130xf32>
    %39 = vector.broadcast %11 : vector<32x1xf32> to vector<32x130xf32>
    %40 = vector.broadcast %16 : vector<1x130xf32> to vector<32x130xf32>
    %41 = arith.mulf %39, %40 : vector<32x130xf32>
    %42 = arith.addf %38, %41 : vector<32x130xf32>
    %43 = vector.broadcast %12 : vector<32x1xf32> to vector<32x130xf32>
    %44 = arith.addf %42, %43 : vector<32x130xf32>
    %cst_15 = arith.constant 0.000000e+00 : f32
    %45 = vector.broadcast %cst_15 : f32 to vector<32x130xf32>
    %46 = arith.maximumf %44, %45 : vector<32x130xf32>
    %47 = tpu.iota {dimensions = array<i32: 1>} : vector<32x130xi32>
    %c128_i32 = arith.constant 128 : i32
    %48 = arith.muli %arg0, %c128_i32 : i32
    %c1_i32 = arith.constant 1 : i32
    %49 = arith.subi %48, %c1_i32 : i32
    %50 = vector.broadcast %49 : i32 to vector<32x130xi32>
    %51 = arith.addi %50, %47 : vector<32x130xi32>
    %c0_i32_16 = arith.constant 0 : i32
    %52 = vector.broadcast %c0_i32_16 : i32 to vector<32x130xi32>
    %53 = arith.cmpi sge, %51, %52 : vector<32x130xi32>
    %c320_i32 = arith.constant 320 : i32
    %54 = vector.broadcast %c320_i32 : i32 to vector<32x130xi32>
    %55 = arith.cmpi slt, %51, %54 : vector<32x130xi32>
    %56 = arith.andi %53, %55 : vector<32x130xi1>
    %cst_17 = arith.constant 0.000000e+00 : f32
    %57 = vector.broadcast %cst_17 : f32 to vector<32x130xf32>
    %58 = arith.select %56, %31, %57 : vector<32x130xi1>, vector<32x130xf32>
    %cst_18 = arith.constant 0.000000e+00 : f32
    %59 = vector.broadcast %cst_18 : f32 to vector<32x130xf32>
    %60 = arith.select %56, %46, %59 : vector<32x130xi1>, vector<32x130xf32>
    %c0_19 = arith.constant 0 : index
    %c0_20 = arith.constant 0 : index
    %c0_21 = arith.constant 0 : index
    %61 = vector.load %arg6[%c0_19, %c0_20, %c0_21] : memref<3x32x32xf32, #tpu.memory_space<vmem>>, vector<1x32x32xf32>
    %62 = vector.shape_cast %61 : vector<1x32x32xf32> to vector<32x32xf32>
    %c1_22 = arith.constant 1 : index
    %c0_23 = arith.constant 0 : index
    %c0_24 = arith.constant 0 : index
    %63 = vector.load %arg6[%c1_22, %c0_23, %c0_24] : memref<3x32x32xf32, #tpu.memory_space<vmem>>, vector<1x32x32xf32>
    %64 = vector.shape_cast %63 : vector<1x32x32xf32> to vector<32x32xf32>
    %c2_25 = arith.constant 2 : index
    %c0_26 = arith.constant 0 : index
    %c0_27 = arith.constant 0 : index
    %65 = vector.load %arg6[%c2_25, %c0_26, %c0_27] : memref<3x32x32xf32, #tpu.memory_space<vmem>>, vector<1x32x32xf32>
    %66 = vector.shape_cast %65 : vector<1x32x32xf32> to vector<32x32xf32>
    %c0_28 = arith.constant 0 : index
    %c0_29 = arith.constant 0 : index
    %67 = vector.load %arg7[%c0_28, %c0_29] : memref<32x1xf32, #tpu.memory_space<vmem>>, vector<32x1xf32>
    %68 = vector.extract_strided_slice %60 {offsets = [0, 0], sizes = [32, 128], strides = [1, 1]} : vector<32x130xf32> to vector<32x128xf32>
    %cst_30 = arith.constant dense<0.000000e+00> : vector<32x128xf32>
    %69 = tpu.matmul %62, %68, %cst_30 {dimension_numbers = #tpu.dot_dimension_numbers<[1], [0], [0], [1], [0, 0, 1, 1], [], []>} : vector<32x32xf32>, vector<32x128xf32>, vector<32x128xf32> -> vector<32x128xf32>
    %70 = vector.extract_strided_slice %58 {offsets = [0, 1], sizes = [32, 128], strides = [1, 1]} : vector<32x130xf32> to vector<32x128xf32>
    %cst_31 = arith.constant dense<0.000000e+00> : vector<32x128xf32>
    %71 = tpu.matmul %64, %70, %cst_31 {dimension_numbers = #tpu.dot_dimension_numbers<[1], [0], [0], [1], [0, 0, 1, 1], [], []>} : vector<32x32xf32>, vector<32x128xf32>, vector<32x128xf32> -> vector<32x128xf32>
    %72 = arith.addf %69, %71 : vector<32x128xf32>
    %73 = vector.extract_strided_slice %60 {offsets = [0, 1], sizes = [32, 128], strides = [1, 1]} : vector<32x130xf32> to vector<32x128xf32>
    %cst_32 = arith.constant dense<0.000000e+00> : vector<32x128xf32>
    %74 = tpu.matmul %66, %73, %cst_32 {dimension_numbers = #tpu.dot_dimension_numbers<[1], [0], [0], [1], [0, 0, 1, 1], [], []>} : vector<32x32xf32>, vector<32x128xf32>, vector<32x128xf32> -> vector<32x128xf32>
    %75 = arith.addf %72, %74 : vector<32x128xf32>
    %76 = vector.broadcast %67 : vector<32x1xf32> to vector<32x128xf32>
    %77 = arith.addf %75, %76 : vector<32x128xf32>
    %cst_33 = arith.constant 0.000000e+00 : f32
    %78 = vector.broadcast %cst_33 : f32 to vector<32x128xf32>
    %79 = arith.maximumf %77, %78 : vector<32x128xf32>
    %80 = vector.extract_strided_slice %58 {offsets = [0, 1], sizes = [32, 128], strides = [1, 1]} : vector<32x130xf32> to vector<32x128xf32>
    %cst_34 = arith.constant dense<0.000000e+00> : vector<32x128xf32>
    %81 = tpu.matmul %62, %80, %cst_34 {dimension_numbers = #tpu.dot_dimension_numbers<[1], [0], [0], [1], [0, 0, 1, 1], [], []>} : vector<32x32xf32>, vector<32x128xf32>, vector<32x128xf32> -> vector<32x128xf32>
    %82 = vector.extract_strided_slice %60 {offsets = [0, 1], sizes = [32, 128], strides = [1, 1]} : vector<32x130xf32> to vector<32x128xf32>
    %cst_35 = arith.constant dense<0.000000e+00> : vector<32x128xf32>
    %83 = tpu.matmul %64, %82, %cst_35 {dimension_numbers = #tpu.dot_dimension_numbers<[1], [0], [0], [1], [0, 0, 1, 1], [], []>} : vector<32x32xf32>, vector<32x128xf32>, vector<32x128xf32> -> vector<32x128xf32>
    %84 = arith.addf %81, %83 : vector<32x128xf32>
    %85 = vector.extract_strided_slice %58 {offsets = [0, 2], sizes = [32, 128], strides = [1, 1]} : vector<32x130xf32> to vector<32x128xf32>
    %cst_36 = arith.constant dense<0.000000e+00> : vector<32x128xf32>
    %86 = tpu.matmul %66, %85, %cst_36 {dimension_numbers = #tpu.dot_dimension_numbers<[1], [0], [0], [1], [0, 0, 1, 1], [], []>} : vector<32x32xf32>, vector<32x128xf32>, vector<32x128xf32> -> vector<32x128xf32>
    %87 = arith.addf %84, %86 : vector<32x128xf32>
    %88 = vector.broadcast %67 : vector<32x1xf32> to vector<32x128xf32>
    %89 = arith.addf %87, %88 : vector<32x128xf32>
    %cst_37 = arith.constant 0.000000e+00 : f32
    %90 = vector.broadcast %cst_37 : f32 to vector<32x128xf32>
    %91 = arith.maximumf %89, %90 : vector<32x128xf32>
    %92 = arith.maximumf %79, %91 : vector<32x128xf32>
    %c0_38 = arith.constant 0 : index
    %c0_39 = arith.constant 0 : index
    %c0_40 = arith.constant 0 : index
    %93 = vector.load %arg8[%c0_38, %c0_39, %c0_40] : memref<8x32x128xbf16, #tpu.memory_space<vmem>>, vector<1x32x128xbf16>
    %94 = vector.shape_cast %93 : vector<1x32x128xbf16> to vector<32x128xbf16>
    %95 = arith.extf %94 : vector<32x128xbf16> to vector<32x128xf32>
    %96 = arith.mulf %95, %92 : vector<32x128xf32>
    %cst_41 = arith.constant dense<0.000000e+00> : vector<32xf32>
    %97 = vector.multi_reduction <add>, %96, %cst_41 [1] : vector<32x128xf32> to vector<32xf32>
    %98 = vector.shape_cast %97 : vector<32xf32> to vector<32x1xf32>
    %c1_42 = arith.constant 1 : index
    %c0_43 = arith.constant 0 : index
    %c0_44 = arith.constant 0 : index
    %99 = vector.load %arg8[%c1_42, %c0_43, %c0_44] : memref<8x32x128xbf16, #tpu.memory_space<vmem>>, vector<1x32x128xbf16>
    %100 = vector.shape_cast %99 : vector<1x32x128xbf16> to vector<32x128xbf16>
    %101 = arith.extf %100 : vector<32x128xbf16> to vector<32x128xf32>
    %102 = arith.mulf %101, %92 : vector<32x128xf32>
    %cst_45 = arith.constant dense<0.000000e+00> : vector<32xf32>
    %103 = vector.multi_reduction <add>, %102, %cst_45 [1] : vector<32x128xf32> to vector<32xf32>
    %104 = vector.shape_cast %103 : vector<32xf32> to vector<32x1xf32>
    %c2_46 = arith.constant 2 : index
    %c0_47 = arith.constant 0 : index
    %c0_48 = arith.constant 0 : index
    %105 = vector.load %arg8[%c2_46, %c0_47, %c0_48] : memref<8x32x128xbf16, #tpu.memory_space<vmem>>, vector<1x32x128xbf16>
    %106 = vector.shape_cast %105 : vector<1x32x128xbf16> to vector<32x128xbf16>
    %107 = arith.extf %106 : vector<32x128xbf16> to vector<32x128xf32>
    %108 = arith.mulf %107, %92 : vector<32x128xf32>
    %cst_49 = arith.constant dense<0.000000e+00> : vector<32xf32>
    %109 = vector.multi_reduction <add>, %108, %cst_49 [1] : vector<32x128xf32> to vector<32xf32>
    %110 = vector.shape_cast %109 : vector<32xf32> to vector<32x1xf32>
    %c3 = arith.constant 3 : index
    %c0_50 = arith.constant 0 : index
    %c0_51 = arith.constant 0 : index
    %111 = vector.load %arg8[%c3, %c0_50, %c0_51] : memref<8x32x128xbf16, #tpu.memory_space<vmem>>, vector<1x32x128xbf16>
    %112 = vector.shape_cast %111 : vector<1x32x128xbf16> to vector<32x128xbf16>
    %113 = arith.extf %112 : vector<32x128xbf16> to vector<32x128xf32>
    %114 = arith.mulf %113, %92 : vector<32x128xf32>
    %cst_52 = arith.constant dense<0.000000e+00> : vector<32xf32>
    %115 = vector.multi_reduction <add>, %114, %cst_52 [1] : vector<32x128xf32> to vector<32xf32>
    %116 = vector.shape_cast %115 : vector<32xf32> to vector<32x1xf32>
    %c4 = arith.constant 4 : index
    %c0_53 = arith.constant 0 : index
    %c0_54 = arith.constant 0 : index
    %117 = vector.load %arg8[%c4, %c0_53, %c0_54] : memref<8x32x128xbf16, #tpu.memory_space<vmem>>, vector<1x32x128xbf16>
    %118 = vector.shape_cast %117 : vector<1x32x128xbf16> to vector<32x128xbf16>
    %119 = arith.extf %118 : vector<32x128xbf16> to vector<32x128xf32>
    %120 = arith.mulf %119, %92 : vector<32x128xf32>
    %cst_55 = arith.constant dense<0.000000e+00> : vector<32xf32>
    %121 = vector.multi_reduction <add>, %120, %cst_55 [1] : vector<32x128xf32> to vector<32xf32>
    %122 = vector.shape_cast %121 : vector<32xf32> to vector<32x1xf32>
    %c5 = arith.constant 5 : index
    %c0_56 = arith.constant 0 : index
    %c0_57 = arith.constant 0 : index
    %123 = vector.load %arg8[%c5, %c0_56, %c0_57] : memref<8x32x128xbf16, #tpu.memory_space<vmem>>, vector<1x32x128xbf16>
    %124 = vector.shape_cast %123 : vector<1x32x128xbf16> to vector<32x128xbf16>
    %125 = arith.extf %124 : vector<32x128xbf16> to vector<32x128xf32>
    %126 = arith.mulf %125, %92 : vector<32x128xf32>
    %cst_58 = arith.constant dense<0.000000e+00> : vector<32xf32>
    %127 = vector.multi_reduction <add>, %126, %cst_58 [1] : vector<32x128xf32> to vector<32xf32>
    %128 = vector.shape_cast %127 : vector<32xf32> to vector<32x1xf32>
    %c6 = arith.constant 6 : index
    %c0_59 = arith.constant 0 : index
    %c0_60 = arith.constant 0 : index
    %129 = vector.load %arg8[%c6, %c0_59, %c0_60] : memref<8x32x128xbf16, #tpu.memory_space<vmem>>, vector<1x32x128xbf16>
    %130 = vector.shape_cast %129 : vector<1x32x128xbf16> to vector<32x128xbf16>
    %131 = arith.extf %130 : vector<32x128xbf16> to vector<32x128xf32>
    %132 = arith.mulf %131, %92 : vector<32x128xf32>
    %cst_61 = arith.constant dense<0.000000e+00> : vector<32xf32>
    %133 = vector.multi_reduction <add>, %132, %cst_61 [1] : vector<32x128xf32> to vector<32xf32>
    %134 = vector.shape_cast %133 : vector<32xf32> to vector<32x1xf32>
    %c7 = arith.constant 7 : index
    %c0_62 = arith.constant 0 : index
    %c0_63 = arith.constant 0 : index
    %135 = vector.load %arg8[%c7, %c0_62, %c0_63] : memref<8x32x128xbf16, #tpu.memory_space<vmem>>, vector<1x32x128xbf16>
    %136 = vector.shape_cast %135 : vector<1x32x128xbf16> to vector<32x128xbf16>
    %137 = arith.extf %136 : vector<32x128xbf16> to vector<32x128xf32>
    %138 = arith.mulf %137, %92 : vector<32x128xf32>
    %cst_64 = arith.constant dense<0.000000e+00> : vector<32xf32>
    %139 = vector.multi_reduction <add>, %138, %cst_64 [1] : vector<32x128xf32> to vector<32xf32>
    %140 = vector.shape_cast %139 : vector<32xf32> to vector<32x1xf32>
    %141 = tpu.concatenate %98, %104, %110, %116, %122, %128, %134, %140 in 1 : vector<32x1xf32>, vector<32x1xf32>, vector<32x1xf32>, vector<32x1xf32>, vector<32x1xf32>, vector<32x1xf32>, vector<32x1xf32>, vector<32x1xf32> -> vector<32x8xf32>
    %cst_65 = arith.constant dense<0.000000e+00> : vector<8xf32>
    %142 = vector.multi_reduction <add>, %141, %cst_65 [0] : vector<32x8xf32> to vector<8xf32>
    %143 = vector.shape_cast %142 : vector<8xf32> to vector<1x8xf32>
    %144 = arith.index_cast %arg1 : i32 to index
    %c0_66 = arith.constant 0 : index
    %145 = vector.load %arg10[%144, %c0_66] : memref<2x8xf32, #tpu.memory_space<vmem>>, vector<1x8xf32>
    %146 = arith.addf %145, %143 : vector<1x8xf32>
    %147 = arith.index_cast %arg1 : i32 to index
    %c0_67 = arith.constant 0 : index
    %148 = vector.load %arg10[%147, %c0_67] : memref<2x8xf32, #tpu.memory_space<vmem>>, vector<1x8xf32>
    tpu.vector_store %arg10[%147, %c0_67], %146 {strides = array<i32>} : memref<2x8xf32, #tpu.memory_space<vmem>>, vector<1x8xf32>,
    return
  }
  func.func @transform_0(%arg0: i32, %arg1: i32) -> (i32, i32, i32, i32) {
    %c0_i32 = arith.constant 0 : i32
    %c0_i32_0 = arith.constant 0 : i32
    %c0_i32_1 = arith.constant 0 : i32
    return %arg1, %arg0, %c0_i32, %c0_i32_0 : i32, i32, i32, i32
  }
  func.func @transform_1(%arg0: i32, %arg1: i32) -> (i32, i32, i32, i32) {
    %c0_i32 = arith.constant 0 : i32
    %c0_i32_0 = arith.constant 0 : i32
    %c0_i32_1 = arith.constant 0 : i32
    return %arg1, %arg0, %c0_i32, %c0_i32_0 : i32, i32, i32, i32
  }
  func.func @transform_2(%arg0: i32, %arg1: i32) -> (i32, i32) {
    %c0_i32 = arith.constant 0 : i32
    %c0_i32_0 = arith.constant 0 : i32
    %c0_i32_1 = arith.constant 0 : i32
    return %c0_i32, %c0_i32_0 : i32, i32
  }
  func.func @transform_3(%arg0: i32, %arg1: i32) -> (i32, i32) {
    %c0_i32 = arith.constant 0 : i32
    %c0_i32_0 = arith.constant 0 : i32
    %c0_i32_1 = arith.constant 0 : i32
    return %c0_i32, %c0_i32_0 : i32, i32
  }
  func.func @transform_4(%arg0: i32, %arg1: i32) -> (i32, i32, i32) {
    %c0_i32 = arith.constant 0 : i32
    %c0_i32_0 = arith.constant 0 : i32
    %c0_i32_1 = arith.constant 0 : i32
    %c0_i32_2 = arith.constant 0 : i32
    return %c0_i32, %c0_i32_0, %c0_i32_1 : i32, i32, i32
  }
  func.func @transform_5(%arg0: i32, %arg1: i32) -> (i32, i32) {
    %c0_i32 = arith.constant 0 : i32
    %c0_i32_0 = arith.constant 0 : i32
    %c0_i32_1 = arith.constant 0 : i32
    return %c0_i32, %c0_i32_0 : i32, i32
  }
  func.func @transform_6(%arg0: i32, %arg1: i32) -> (i32, i32, i32) {
    %c0_i32 = arith.constant 0 : i32
    %c0_i32_0 = arith.constant 0 : i32
    %c0_i32_1 = arith.constant 0 : i32
    return %c0_i32, %c0_i32_0, %arg0 : i32, i32, i32
  }
  func.func @transform_7(%arg0: i32, %arg1: i32) -> (i32, i32) {
    %c0_i32 = arith.constant 0 : i32
    %c0_i32_0 = arith.constant 0 : i32
    %c0_i32_1 = arith.constant 0 : i32
    return %c0_i32, %c0_i32_0 : i32, i32
  }
  func.func @transform_8(%arg0: i32, %arg1: i32) -> (i32, i32) {
    %c0_i32 = arith.constant 0 : i32
    %c0_i32_0 = arith.constant 0 : i32
    %c0_i32_1 = arith.constant 0 : i32
    return %c0_i32, %c0_i32_0 : i32, i32
  }
}

</mosaic_0001>

<llo_original>
// kernel: tpu_custom_call.1
$region0: #{tpu_custom_call.1}
  #allocation0 [shape = 'u32[]', space=smem, size = 0x4, offset = 0x4, fixed_abs, tag = 'smem constant byte address 0x4 - core index']
  #allocation1 [shape = 'u32[72,128]{1,0:T(1,128)}', space=vmem, size = 0x9000, scoped, tag = 'internal scratch']
  %s0 = inlined_call_operand.vmem [shape: f32[2,3,1,132], index: 0, kind: input, shape index: {}]
  %s1 = inlined_call_operand.vmem [shape: f32[2,3,1,132], index: 1, kind: input, shape index: {}]
  %s2 = inlined_call_operand.vmem [shape: f32[32,3], index: 2, kind: input, shape index: {}]
  %s3 = inlined_call_operand.vmem [shape: f32[32,1], index: 3, kind: input, shape index: {}]
  %s4 = inlined_call_operand.hbm [shape: f32[3,32,32], index: 4, kind: input, shape index: {}]
  %s5 = inlined_call_operand.vmem [shape: f32[32,1], index: 5, kind: input, shape index: {}]
  %s6 = inlined_call_operand.hbm [shape: bf16[8,32,384], index: 6, kind: input, shape index: {}]
  %s7 = inlined_call_operand.vmem [shape: f32[1,8], index: 7, kind: input, shape index: {}]
  %s8 = inlined_call_operand.hbm [shape: f32[2,8], index: 8, kind: output, shape index: {}]
  %s9 = sld [smem:[#allocation0]]
  $region77: #{tpu_custom_call.1} parent=0
    _
  %s11 = ssub.s32 1, %s9
  %s12 = scalar_select 0, %s11, %s9
  $region1: #{tpu_custom_call.1} parent=0
    #allocation2 [shape = 'u8[49152]{0}', space=vmem, size = 0xc000, scoped, tag = 'input window, operand 4, single buffered']
    #allocation3 [shape = 's32[2]{0}', space=sflag, size = 0x8, scoped, tag = 'scoped memory for tpu_custom_call.1']
    #allocation4 [shape = 's32[2]{0}', space=sflag, size = 0x8, scoped, tag = 'scoped memory for tpu_custom_call.1']
    #allocation5 [shape = 'u8[131072]{0}', space=vmem, size = 0x20000, scoped, tag = 'input window, operand 6']
    #allocation6 [shape = 's32[2]{0}', space=sflag, size = 0x8, scoped, tag = 'scoped memory for tpu_custom_call.1']
    #allocation7 [shape = 'u8[1024]{0}', space=vmem, size = 0x400, scoped, tag = 'output window, operand 0, single buffered']
    %13 = vsyncpa [#allocation3], 0
    %14 = vsyncpa [#allocation6], 0
    %s15 = scalar_lea.sflag [#allocation6], 1
    %16 = vsyncpa %s15, 0
    %17 = vsyncpa [#allocation4], 0
    loop: start=0, step=1, limit=8
    $region2: #{tpu_custom_call.1} parent=1 // loop_pre_header
      _
    $region3: #{tpu_custom_call.1} parent=1 // loop_header
      %s19 = sphi 0, %s23
      %p20 = scmp.ge.s32.totalorder %s19, 8
      %s26 = sphi 0, %s38
      %s27 = sphi 0, %s34
      %s28 = sphi 0, %s26
      %s29 = sphi 0, %s27
      %s30 = sphi 0, %s28
      %s31 = sphi 0, %s29
      %s43 = sphi 0, %s45
      %s46 = sphi 0, %s43
      %s47 = sphi 0, %s46
      %s63 = sphi 0, %s47
      %s71 = sphi 0, %s73
      %s74 = sphi 0, %s71
      %s75 = sphi 0, %s74
      %s91 = sphi 0, %s75
      %s95 = sphi 0, %s95
      %s97 = sphi 0, %s95
      %s98 = sphi 0, %s97
      %s112 = sphi 0, %s98
      %s116 = sphi 0, %s116
      %s118 = sphi 0, %s116
      %s119 = sphi 0, %s118
      %s133 = sphi 0, %s119
      %s137 = sphi 0, %s137
      %s139 = sphi 0, %s137
      %s140 = sphi 0, %s139
      %s154 = sphi 0, %s140
      %s158 = sphi 0, %s158
      %s160 = sphi 0, %s158
      %s161 = sphi 0, %s160
      %s175 = sphi 0, %s161
      %s181 = sphi 0, %s183
      %s184 = sphi 0, %s181
      %s185 = sphi 0, %s184
      %s201 = sphi 0, %s185
      %s205 = sphi 0, %s205
      %s207 = sphi 0, %s205
      %s208 = sphi 0, %s207
      %s222 = sphi 0, %s208
      %s226 = sphi 0, %s226
      %s228 = sphi 0, %s226
      %s229 = sphi 0, %s228
      %s243 = sphi 0, %s229
    $region4: #{tpu_custom_call.1} parent=1 // loop_header_branch
      %22 = sbr.rel (%p20) target = $region8
    $region5: #{tpu_custom_call.1} parent=1 // loop_body
      %s24 = ssub.s32 %s19, 1
      %s25 = ssub.s32 %s19, 2
      %s32 = sadd.s32 1, %s27
      %p33 = scmp.ge.s32.totalorder %s32, 2
      %s34 = scalar_select %p33, 0, %s32
      %s35 = sadd.s32 1, %s26
      %s36 = scalar_select %p33, %s35, %s26
      %p37 = scmp.ge.s32.totalorder %s36, 3
      %s38 = scalar_select %p37, 0, %s36
      %s39 = ssub.s32 %s27, %s34
      %s40 = ssub.s32 %s26, %s38
      %s41 = sor.u32 %s39, %s40
      %p42 = scmp.eq.s32.totalorder %s41, 0
      %s44 = sadd.s32 %s43, 1
      %s45 = scalar_select %p42, %s43, %s44
      %p48 = pneg %p42
      %p49 = scmp.eq.s32.totalorder %s19, 5
      %p50 = por %p48, %p49
      %p51 = scmp.ne.s32.totalorder %s43, %s46
      %p52 = scmp.eq.s32.totalorder %s19, 0
      %p53 = por %p51, %p52
      %p54 = scmp.ne.s32.totalorder %s43, %s46
      %p55 = scmp.eq.s32.totalorder %s24, 5
      %p56 = por %p54, %p55
      %p57 = scmp.ne.s32.totalorder %s46, %s47
      %p58 = scmp.eq.s32.totalorder %s24, 0
      %p59 = por %p57, %p58
      %p60 = scmp.ne.s32.totalorder %s46, %s47
      %p61 = scmp.eq.s32.totalorder %s25, 5
      %p62 = por %p60, %p61
      %p64 = scmp.ne.s32.totalorder %s47, %s63
      %p65 = scmp.eq.s32.totalorder %s25, 0
      %p66 = por %p64, %p65
      %s67 = ssub.s32 %s27, %s34
      %s68 = ssub.s32 %s26, %s38
      %s69 = sor.u32 %s67, %s68
      %p70 = scmp.eq.s32.totalorder %s69, 0
      %s72 = sadd.s32 %s71, 1
      %s73 = scalar_select %p70, %s71, %s72
      %p76 = pneg %p70
      %p77 = scmp.eq.s32.totalorder %s19, 5
      %p78 = por %p76, %p77
      %p79 = scmp.ne.s32.totalorder %s71, %s74
      %p80 = scmp.eq.s32.totalorder %s19, 0
      %p81 = por %p79, %p80
      %p82 = scmp.ne.s32.totalorder %s71, %s74
      %p83 = scmp.eq.s32.totalorder %s24, 5
      %p84 = por %p82, %p83
      %p85 = scmp.ne.s32.totalorder %s74, %s75
      %p86 = scmp.eq.s32.totalorder %s24, 0
      %p87 = por %p85, %p86
      %p88 = scmp.ne.s32.totalorder %s74, %s75
      %p89 = scmp.eq.s32.totalorder %s25, 5
      %p90 = por %p88, %p89
      %p92 = scmp.ne.s32.totalorder %s75, %s91
      %p93 = scmp.eq.s32.totalorder %s25, 0
      %p94 = por %p92, %p93
      %s96 = sadd.s32 %s95, 1
      %p99 = scmp.eq.s32.totalorder %s19, 5
      %p100 = scmp.ne.s32.totalorder %s95, %s97
      %p101 = scmp.eq.s32.totalorder %s19, 0
      %p102 = por %p100, %p101
      %p103 = scmp.ne.s32.totalorder %s95, %s97
      %p104 = scmp.eq.s32.totalorder %s24, 5
      %p105 = por %p103, %p104
      %p106 = scmp.ne.s32.totalorder %s97, %s98
      %p107 = scmp.eq.s32.totalorder %s24, 0
      %p108 = por %p106, %p107
      %p109 = scmp.ne.s32.totalorder %s97, %s98
      %p110 = scmp.eq.s32.totalorder %s25, 5
      %p111 = por %p109, %p110
      %p113 = scmp.ne.s32.totalorder %s98, %s112
      %p114 = scmp.eq.s32.totalorder %s25, 0
      %p115 = por %p113, %p114
      %s117 = sadd.s32 %s116, 1
      %p120 = scmp.eq.s32.totalorder %s19, 5
      %p121 = scmp.ne.s32.totalorder %s116, %s118
      %p122 = scmp.eq.s32.totalorder %s19, 0
      %p123 = por %p121, %p122
      %p124 = scmp.ne.s32.totalorder %s116, %s118
      %p125 = scmp.eq.s32.totalorder %s24, 5
      %p126 = por %p124, %p125
      %p127 = scmp.ne.s32.totalorder %s118, %s119
      %p128 = scmp.eq.s32.totalorder %s24, 0
      %p129 = por %p127, %p128
      %p130 = scmp.ne.s32.totalorder %s118, %s119
      %p131 = scmp.eq.s32.totalorder %s25, 5
      %p132 = por %p130, %p131
      %p134 = scmp.ne.s32.totalorder %s119, %s133
      %p135 = scmp.eq.s32.totalorder %s25, 0
      %p136 = por %p134, %p135
      %s138 = sadd.s32 %s137, 1
      %p141 = scmp.eq.s32.totalorder %s19, 5
      %p142 = scmp.ne.s32.totalorder %s137, %s139
      %p143 = scmp.eq.s32.totalorder %s19, 0
      %p144 = por %p142, %p143
      %p145 = scmp.ne.s32.totalorder %s137, %s139
      %p146 = scmp.eq.s32.totalorder %s24, 5
      %p147 = por %p145, %p146
      %p148 = scmp.ne.s32.totalorder %s139, %s140
      %p149 = scmp.eq.s32.totalorder %s24, 0
      %p150 = por %p148, %p149
      %p151 = scmp.ne.s32.totalorder %s139, %s140
      %p152 = scmp.eq.s32.totalorder %s25, 5
      %p153 = por %p151, %p152
      %p155 = scmp.ne.s32.totalorder %s140, %s154
      %p156 = scmp.eq.s32.totalorder %s25, 0
      %p157 = por %p155, %p156
      %s159 = sadd.s32 %s158, 1
      %p162 = scmp.eq.s32.totalorder %s19, 5
      %p163 = scmp.ne.s32.totalorder %s158, %s160
      %p164 = scmp.eq.s32.totalorder %s19, 0
      %p165 = por %p163, %p164
      %p166 = scmp.ne.s32.totalorder %s158, %s160
      %p167 = scmp.eq.s32.totalorder %s24, 5
      %p168 = por %p166, %p167
      %p169 = scmp.ne.s32.totalorder %s160, %s161
      %p170 = scmp.eq.s32.totalorder %s24, 0
      %p171 = por %p169, %p170
      %p172 = scmp.ne.s32.totalorder %s160, %s161
      %p173 = scmp.eq.s32.totalorder %s25, 5
      %p174 = por %p172, %p173
      %p176 = scmp.ne.s32.totalorder %s161, %s175
      %p177 = scmp.eq.s32.totalorder %s25, 0
      %p178 = por %p176, %p177
      %s179 = ssub.s32 %s26, %s38
      %p180 = scmp.eq.s32.totalorder %s179, 0
      %s182 = sadd.s32 %s181, 1
      %s183 = scalar_select %p180, %s181, %s182
      %p186 = pneg %p180
      %p187 = scmp.eq.s32.totalorder %s19, 5
      %p188 = por %p186, %p187
      %p189 = scmp.ne.s32.totalorder %s181, %s184
      %p190 = scmp.eq.s32.totalorder %s19, 0
      %p191 = por %p189, %p190
      %p192 = scmp.ne.s32.totalorder %s181, %s184
      %p193 = scmp.eq.s32.totalorder %s24, 5
      %p194 = por %p192, %p193
      %p195 = scmp.ne.s32.totalorder %s184, %s185
      %p196 = scmp.eq.s32.totalorder %s24, 0
      %p197 = por %p195, %p196
      %p198 = scmp.ne.s32.totalorder %s184, %s185
      %p199 = scmp.eq.s32.totalorder %s25, 5
      %p200 = por %p198, %p199
      %p202 = scmp.ne.s32.totalorder %s185, %s201
      %p203 = scmp.eq.s32.totalorder %s25, 0
      %p204 = por %p202, %p203
      %s206 = sadd.s32 %s205, 1
      %p209 = scmp.eq.s32.totalorder %s19, 5
      %p210 = scmp.ne.s32.totalorder %s205, %s207
      %p211 = scmp.eq.s32.totalorder %s19, 0
      %p212 = por %p210, %p211
      %p213 = scmp.ne.s32.totalorder %s205, %s207
      %p214 = scmp.eq.s32.totalorder %s24, 5
      %p215 = por %p213, %p214
      %p216 = scmp.ne.s32.totalorder %s207, %s208
      %p217 = scmp.eq.s32.totalorder %s24, 0
      %p218 = por %p216, %p217
      %p219 = scmp.ne.s32.totalorder %s207, %s208
      %p220 = scmp.eq.s32.totalorder %s25, 5
      %p221 = por %p219, %p220
      %p223 = scmp.ne.s32.totalorder %s208, %s222
      %p224 = scmp.eq.s32.totalorder %s25, 0
      %p225 = por %p223, %p224
      %s227 = sadd.s32 %s226, 1
      %p230 = scmp.eq.s32.totalorder %s19, 5
      %p231 = scmp.ne.s32.totalorder %s226, %s228
      %p232 = scmp.eq.s32.totalorder %s19, 0
      %p233 = por %p231, %p232
      %p234 = scmp.ne.s32.totalorder %s226, %s228
      %p235 = scmp.eq.s32.totalorder %s24, 5
      %p236 = por %p234, %p235
      %p237 = scmp.ne.s32.totalorder %s228, %s229
      %p238 = scmp.eq.s32.totalorder %s24, 0
      %p239 = por %p237, %p238
      %p240 = scmp.ne.s32.totalorder %s228, %s229
      %p241 = scmp.eq.s32.totalorder %s25, 5
      %p242 = por %p240, %p241
      %p244 = scmp.ne.s32.totalorder %s229, %s243
      %p245 = scmp.eq.s32.totalorder %s25, 0
      %p246 = por %p244, %p245
      %p247 = scmp.le.s32.totalorder 1, %s19
      %p248 = scmp.lt.s32.totalorder %s19, 7
      %p249 = pnand %p247, %p248
      %p250 = pneg %p249
      // Predicated region
      $region9: #{tpu_custom_call.1} parent=5 // pred_check
        _
      $region10: #{tpu_custom_call.1} parent=5 // pred_check_branch
        %252 = sbr.rel (%p249) target = $region12
      $region11: #{tpu_custom_call.1} parent=5 // pred_region
        %s253 = ssub.s32 %s19, 1
        // Predicated region
        $region13: #{tpu_custom_call.1} parent=11 // pred_check
          %p254 = pneg %p108
        $region14: #{tpu_custom_call.1} parent=11 // pred_check_branch
          %256 = sbr.rel (%p254) target = $region16
        $region15: #{tpu_custom_call.1} parent=11 // pred_region
          _
        $region16: #{tpu_custom_call.1} parent=11 // pred_fallthru
          _
        // Predicated region
        $region17: #{tpu_custom_call.1} parent=11 // pred_check
          %p257 = pneg %p129
        $region18: #{tpu_custom_call.1} parent=11 // pred_check_branch
          %259 = sbr.rel (%p257) target = $region20
        $region19: #{tpu_custom_call.1} parent=11 // pred_region
          _
        $region20: #{tpu_custom_call.1} parent=11 // pred_fallthru
          _
        // Predicated region
        $region21: #{tpu_custom_call.1} parent=11 // pred_check
          %p260 = pneg %p150
        $region22: #{tpu_custom_call.1} parent=11 // pred_check_branch
          %262 = sbr.rel (%p260) target = $region24
        $region23: #{tpu_custom_call.1} parent=11 // pred_region
          %264 = vsyncadd [#allocation3], 0
          %s265 = sshll.u32 %s4, 4
          %s266 = int_to_ptr.hbm [resolvable:$true] %s265
          %s267 = sshll.u32 [#allocation2], 4
          %s268 = int_to_ptr.vmem [resolvable:$true] %s267
          %273 = dma.hbm_to_vmem [thread:$0]  %s266, 1536, %s268, [#allocation3], 128, 128, 8
        $region24: #{tpu_custom_call.1} parent=11 // pred_fallthru
          _
        // Predicated region
        $region25: #{tpu_custom_call.1} parent=11 // pred_check
          %p274 = pneg %p171
        $region26: #{tpu_custom_call.1} parent=11 // pred_check_branch
          %276 = sbr.rel (%p274) target = $region28
        $region27: #{tpu_custom_call.1} parent=11 // pred_region
          _
        $region28: #{tpu_custom_call.1} parent=11 // pred_fallthru
          _
        // Predicated region
        $region29: #{tpu_custom_call.1} parent=11 // pred_check
          %p277 = pneg %p218
        $region30: #{tpu_custom_call.1} parent=11 // pred_check_branch
          %279 = sbr.rel (%p277) target = $region32
        $region31: #{tpu_custom_call.1} parent=11 // pred_region
          _
        $region32: #{tpu_custom_call.1} parent=11 // pred_fallthru
          _
      $region12: #{tpu_custom_call.1} parent=5 // pred_fallthru
        _
      %p280 = scmp.lt.s32.totalorder %s19, 6
      // Predicated region
      $region33: #{tpu_custom_call.1} parent=5 // pred_check
        %p281 = pneg %p280
      $region34: #{tpu_custom_call.1} parent=5 // pred_check_branch
        %283 = sbr.rel (%p281) target = $region36
      $region35: #{tpu_custom_call.1} parent=5 // pred_region
        // Predicated region
        $region37: #{tpu_custom_call.1} parent=35 // pred_check
          %p284 = pneg %p53
        $region38: #{tpu_custom_call.1} parent=35 // pred_check_branch
          %286 = sbr.rel (%p284) target = $region40
        $region39: #{tpu_custom_call.1} parent=35 // pred_region
          %p287 = scmp.lt.s32.totalorder %s27, 1
          %s288 = scalar_select %p287, %s27, 1
          %p289 = scmp.lt.s32.totalorder %s26, 2
          %s290 = scalar_select %p289, %s26, 2
          %s291 = smul.addr %s290, 2
          %s292 = smul.addr %s288, 6
          %s293 = sadd.s32 %s291, %s292
          %s294 = scalar_lea.vmem %s0, %s293
        $region40: #{tpu_custom_call.1} parent=35 // pred_fallthru
          _
        // Predicated region
        $region41: #{tpu_custom_call.1} parent=35 // pred_check
          %p295 = pneg %p81
        $region42: #{tpu_custom_call.1} parent=35 // pred_check_branch
          %297 = sbr.rel (%p295) target = $region44
        $region43: #{tpu_custom_call.1} parent=35 // pred_region
          %p298 = scmp.lt.s32.totalorder %s27, 1
          %s299 = scalar_select %p298, %s27, 1
          %p300 = scmp.lt.s32.totalorder %s26, 2
          %s301 = scalar_select %p300, %s26, 2
          %s302 = smul.addr %s301, 2
          %s303 = smul.addr %s299, 6
          %s304 = sadd.s32 %s302, %s303
          %s305 = scalar_lea.vmem %s1, %s304
        $region44: #{tpu_custom_call.1} parent=35 // pred_fallthru
          _
        // Predicated region
        $region45: #{tpu_custom_call.1} parent=35 // pred_check
          %p306 = pneg %p191
        $region46: #{tpu_custom_call.1} parent=35 // pred_check_branch
          %308 = sbr.rel (%p306) target = $region48
        $region47: #{tpu_custom_call.1} parent=35 // pred_region
          %s309 = sand.u32 %s181, 1
          %s310 = scalar_lea.sflag [#allocation6], %s309
          %s311 = sand.u32 %s181, 1
          %s312 = smul.addr %s311, 128
          %s313 = scalar_lea.vmem [#allocation5], %s312
          %315 = vsyncadd %s310, 0
          %s316 = smul.addr %s26, 4
          %s317 = scalar_lea.hbm %s6, %s316
          %s318 = sshll.u32 %s317, 4
          %s319 = int_to_ptr.hbm [resolvable:$true] %s318
          %s320 = sshll.u32 %s313, 4
          %s321 = int_to_ptr.vmem [resolvable:$true] %s320
          %326 = dma.hbm_to_vmem [thread:$0]  %s319, 2048, %s321, %s310, 192, 64, 4
        $region48: #{tpu_custom_call.1} parent=35 // pred_fallthru
          _
      $region36: #{tpu_custom_call.1} parent=5 // pred_fallthru
        _
      %p327 = scmp.le.s32.totalorder 1, %s19
      %p328 = scmp.lt.s32.totalorder %s19, 7
      %p329 = pnand %p327, %p328
      %p330 = pneg %p329
      // Predicated region
      $region49: #{tpu_custom_call.1} parent=5 // pred_check
        _
      $region50: #{tpu_custom_call.1} parent=5 // pred_check_branch
        %332 = sbr.rel (%p329) target = $region52
      $region51: #{tpu_custom_call.1} parent=5 // pred_region
        %s333 = ssub.s32 %s19, 1
        // Predicated region
        $region53: #{tpu_custom_call.1} parent=51 // pred_check
          %p334 = pneg %p150
        $region54: #{tpu_custom_call.1} parent=51 // pred_check_branch
          %336 = sbr.rel (%p334) target = $region56
        $region55: #{tpu_custom_call.1} parent=51 // pred_region
          %338 = dma.done [#allocation3], 1536
        $region56: #{tpu_custom_call.1} parent=51 // pred_fallthru
          _
        %s339 = sand.u32 %s184, 1
        %s340 = scalar_lea.sflag [#allocation6], %s339
        %s341 = sand.u32 %s184, 1
        %s342 = smul.addr %s341, 128
        %s343 = scalar_lea.vmem [#allocation5], %s342
        // Predicated region
        $region57: #{tpu_custom_call.1} parent=51 // pred_check
          %p344 = pneg %p197
        $region58: #{tpu_custom_call.1} parent=51 // pred_check_branch
          %346 = sbr.rel (%p344) target = $region60
        $region59: #{tpu_custom_call.1} parent=51 // pred_region
          %348 = dma.done %s340, 2048
        $region60: #{tpu_custom_call.1} parent=51 // pred_fallthru
          _
        %p349 = scmp.lt.s32.totalorder %s29, 1
        %s350 = scalar_select %p349, %s29, 1
        %p351 = scmp.lt.s32.totalorder %s28, 2
        %s352 = scalar_select %p351, %s28, 2
        %s353 = smul.addr %s352, 2
        %s354 = smul.addr %s350, 6
        %s355 = sadd.s32 %s353, %s354
        %s356 = scalar_lea.vmem %s0, %s355
        %p357 = pneg %p59
        %p358 = pneg %p56
        %p359 = scmp.lt.s32.totalorder %s29, 1
        %s360 = scalar_select %p359, %s29, 1
        %p361 = scmp.lt.s32.totalorder %s28, 2
        %s362 = scalar_select %p361, %s28, 2
        %s363 = smul.addr %s362, 2
        %s364 = smul.addr %s360, 6
        %s365 = sadd.s32 %s363, %s364
        %s366 = scalar_lea.vmem %s1, %s365
        %p367 = pneg %p87
        %p368 = pneg %p84
        %p369 = pneg %p108
        %p370 = pneg %p105
        %p371 = pneg %p129
        %p372 = pneg %p126
        %p373 = pneg %p150
        %p374 = pneg %p147
        %p375 = pneg %p171
        %p376 = pneg %p168
        %s377 = sand.u32 %s184, 1
        %s378 = scalar_lea.sflag [#allocation6], %s377
        %s379 = sand.u32 %s184, 1
        %s380 = smul.addr %s379, 128
        %s381 = scalar_lea.vmem [#allocation5], %s380
        %p382 = pneg %p197
        %p383 = pneg %p194
        %p384 = pneg %p218
        %p385 = pneg %p215
        %p386 = pneg %p239
        %p387 = pneg %p236
        %p388 = scmp.lt.s32.totalorder %s29, 1
        %s389 = scalar_select %p388, %s29, 1
        %p390 = scmp.lt.s32.totalorder %s28, 2
        %s391 = scalar_select %p390, %s28, 2
        %s392 = smul.addr %s391, 2
        %s393 = smul.addr %s389, 6
        %s394 = sadd.s32 %s392, %s393
        %s395 = scalar_lea.vmem %s0, %s394
        %p396 = scmp.lt.s32.totalorder %s29, 1
        %s397 = scalar_select %p396, %s29, 1
        %p398 = scmp.lt.s32.totalorder %s28, 2
        %s399 = scalar_select %p398, %s28, 2
        %s400 = smul.addr %s399, 2
        %s401 = smul.addr %s397, 6
        %s402 = sadd.s32 %s400, %s401
        %s403 = scalar_lea.vmem %s1, %s402
        %p404 = scmp.eq.s32.totalorder %s28, 0
        %p405 = scmp.eq.s32.totalorder %s29, 0
        %p406 = pnand %p404, %p405
        %p407 = pneg %p406
        // Predicated region
        $region61: #{tpu_custom_call.1} parent=51 // pred_check
          _
        $region62: #{tpu_custom_call.1} parent=51 // pred_check_branch
          %409 = sbr.rel (%p406) target = $region64
        $region63: #{tpu_custom_call.1} parent=51 // pred_region
          %v410 = vld [vmem:[%s7] sm:$0x1]
          %v412 = vperm.slane %v410, 0
          %vm414 = vcmask 58368
          %415 = vst.msk [vmem:[#allocation7] sm:$0x3] %vm414, %v412
        $region64: #{tpu_custom_call.1} parent=51 // pred_fallthru
          _
        %v416 = vld [vmem:[%s395] sm:$0x3]
        %v417 = vld [vmem:[%s403] sm:$0x3]
        %v418 = vld [vmem:[%s2] sm:$0xff]
        %v419 = vld [vmem:[%s2 + $0x8] sm:$0xff]
        %v420 = vld [vmem:[%s2 + $0x10] sm:$0xff]
        %v421 = vld [vmem:[%s2 + $0x18] sm:$0xff]
        %v422 = vld [vmem:[%s3] sm:$0xff]
        %v423 = vld [vmem:[%s3 + $0x8] sm:$0xff]
        %v424 = vld [vmem:[%s3 + $0x10] sm:$0xff]
        %v425 = vld [vmem:[%s3 + $0x18] sm:$0xff]
        %427 = vset.pattern.permute.xlu0 0
        %428 = vperm.xlu0 %427, %v418
        %v429 = vpop.permute.xlu0 %428
        %432 = vset.pattern.permute.xlu0 0
        %433 = vperm.xlu0 %432, %v419
        %v434 = vpop.permute.xlu0 %433
        %437 = vset.pattern.permute.xlu0 0
        %438 = vperm.xlu0 %437, %v420
        %v439 = vpop.permute.xlu0 %438
        %442 = vset.pattern.permute.xlu0 0
        %443 = vperm.xlu0 %442, %v421
        %v444 = vpop.permute.xlu0 %443
        %v447 = vperm.slane %v417, 0
        %v448 = vperm.slane %v417, 1
        %v451 = vmul.f32 %v429, %v447
        %v452 = vmul.f32 %v429, %v448
        %v453 = vmul.f32 %v434, %v447
        %v454 = vmul.f32 %v434, %v448
        %v455 = vmul.f32 %v439, %v447
        %v456 = vmul.f32 %v439, %v448
        %v457 = vmul.f32 %v444, %v447
        %v458 = vmul.f32 %v444, %v448
        %459 = vset.pattern.permute.xlu0 1
        %460 = vperm.xlu0 %459, %v418
        %v461 = vpop.permute.xlu0 %460
        %463 = vset.pattern.permute.xlu0 1
        %464 = vperm.xlu0 %463, %v419
        %v465 = vpop.permute.xlu0 %464
        %467 = vset.pattern.permute.xlu0 1
        %468 = vperm.xlu0 %467, %v420
        %v469 = vpop.permute.xlu0 %468
        %471 = vset.pattern.permute.xlu0 1
        %472 = vperm.xlu0 %471, %v421
        %v473 = vpop.permute.xlu0 %472
        %v476 = vperm.slane %v416, 0
        %v477 = vperm.slane %v416, 1
        %v480 = vmul.f32 %v461, %v476
        %v481 = vmul.f32 %v461, %v477
        %v482 = vmul.f32 %v465, %v476
        %v483 = vmul.f32 %v465, %v477
        %v484 = vmul.f32 %v469, %v476
        %v485 = vmul.f32 %v469, %v477
        %v486 = vmul.f32 %v473, %v476
        %v487 = vmul.f32 %v473, %v477
        %496 = vrot.lane.b32.xlu0 %v480, 127
        %v497 = vpop.permute.xlu0 %496
        %498 = vrot.lane.b32.xlu0 %v481, 127
        %v499 = vpop.permute.xlu0 %498
        %500 = vrot.lane.b32.xlu0 %v482, 127
        %v501 = vpop.permute.xlu0 %500
        %502 = vrot.lane.b32.xlu0 %v483, 127
        %v503 = vpop.permute.xlu0 %502
        %504 = vrot.lane.b32.xlu0 %v484, 127
        %v505 = vpop.permute.xlu0 %504
        %506 = vrot.lane.b32.xlu0 %v485, 127
        %v507 = vpop.permute.xlu0 %506
        %508 = vrot.lane.b32.xlu0 %v486, 127
        %v509 = vpop.permute.xlu0 %508
        %510 = vrot.lane.b32.xlu0 %v487, 127
        %v511 = vpop.permute.xlu0 %510
        %vm512 = vcmask 1039360
        %v513 = vsel %vm512, %v497, %v499
        %v514 = vsel %vm512, %v501, %v503
        %v515 = vsel %vm512, %v505, %v507
        %v516 = vsel %vm512, %v509, %v511
        %v525 = vadd.f32 %v451, %v513
        %v526 = vadd.f32 %v452, %v499
        %v527 = vadd.f32 %v453, %v514
        %v528 = vadd.f32 %v454, %v503
        %v529 = vadd.f32 %v455, %v515
        %v530 = vadd.f32 %v456, %v507
        %v531 = vadd.f32 %v457, %v516
        %v532 = vadd.f32 %v458, %v511
        %533 = vset.pattern.permute.xlu0 2
        %534 = vperm.xlu0 %533, %v418
        %v535 = vpop.permute.xlu0 %534
        %537 = vset.pattern.permute.xlu0 2
        %538 = vperm.xlu0 %537, %v419
        %v539 = vpop.permute.xlu0 %538
        %541 = vset.pattern.permute.xlu0 2
        %542 = vperm.xlu0 %541, %v420
        %v543 = vpop.permute.xlu0 %542
        %545 = vset.pattern.permute.xlu0 2
        %546 = vperm.xlu0 %545, %v421
        %v547 = vpop.permute.xlu0 %546
        %v549 = vmul.f32 %v535, %v447
        %v550 = vmul.f32 %v535, %v448
        %v551 = vmul.f32 %v539, %v447
        %v552 = vmul.f32 %v539, %v448
        %v553 = vmul.f32 %v543, %v447
        %v554 = vmul.f32 %v543, %v448
        %v555 = vmul.f32 %v547, %v447
        %v556 = vmul.f32 %v547, %v448
        %565 = vrot.lane.b32.xlu0 %v549, 127
        %v566 = vpop.permute.xlu0 %565
        %567 = vrot.lane.b32.xlu0 %v550, 127
        %v568 = vpop.permute.xlu0 %567
        %569 = vrot.lane.b32.xlu0 %v551, 127
        %v570 = vpop.permute.xlu0 %569
        %571 = vrot.lane.b32.xlu0 %v552, 127
        %v572 = vpop.permute.xlu0 %571
        %573 = vrot.lane.b32.xlu0 %v553, 127
        %v574 = vpop.permute.xlu0 %573
        %575 = vrot.lane.b32.xlu0 %v554, 127
        %v576 = vpop.permute.xlu0 %575
        %577 = vrot.lane.b32.xlu0 %v555, 127
        %v578 = vpop.permute.xlu0 %577
        %579 = vrot.lane.b32.xlu0 %v556, 127
        %v580 = vpop.permute.xlu0 %579
        %v581 = vsel %vm512, %v566, %v568
        %v582 = vsel %vm512, %v570, %v572
        %v583 = vsel %vm512, %v574, %v576
        %v584 = vsel %vm512, %v578, %v580
        %v593 = vadd.f32 %v525, %v581
        %v594 = vadd.f32 %v526, %v568
        %v595 = vadd.f32 %v527, %v582
        %v596 = vadd.f32 %v528, %v572
        %v597 = vadd.f32 %v529, %v583
        %v598 = vadd.f32 %v530, %v576
        %v599 = vadd.f32 %v531, %v584
        %v600 = vadd.f32 %v532, %v580
        %602 = vset.pattern.permute.xlu0 0
        %603 = vperm.xlu0 %602, %v422
        %v604 = vpop.permute.xlu0 %603
        %607 = vset.pattern.permute.xlu0 0
        %608 = vperm.xlu0 %607, %v423
        %v609 = vpop.permute.xlu0 %608
        %612 = vset.pattern.permute.xlu0 0
        %613 = vperm.xlu0 %612, %v424
        %v614 = vpop.permute.xlu0 %613
        %617 = vset.pattern.permute.xlu0 0
        %618 = vperm.xlu0 %617, %v425
        %v619 = vpop.permute.xlu0 %618
        %v621 = vadd.f32 %v593, %v604
        %v622 = vadd.f32 %v594, %v604
        %v623 = vadd.f32 %v595, %v609
        %v624 = vadd.f32 %v596, %v609
        %v625 = vadd.f32 %v597, %v614
        %v626 = vadd.f32 %v598, %v614
        %v627 = vadd.f32 %v599, %v619
        %v628 = vadd.f32 %v600, %v619
        %v629 = vmax.f32 %v621, 0.0
        %v630 = vmax.f32 %v622, 0.0
        %v631 = vmax.f32 %v623, 0.0
        %v632 = vmax.f32 %v624, 0.0
        %v633 = vmax.f32 %v625, 0.0
        %v634 = vmax.f32 %v626, 0.0
        %v635 = vmax.f32 %v627, 0.0
        %v636 = vmax.f32 %v628, 0.0
        %v637 = vmul.f32 %v429, %v476
        %v638 = vmul.f32 %v429, %v477
        %v639 = vmul.f32 %v434, %v476
        %v640 = vmul.f32 %v434, %v477
        %v641 = vmul.f32 %v439, %v476
        %v642 = vmul.f32 %v439, %v477
        %v643 = vmul.f32 %v444, %v476
        %v644 = vmul.f32 %v444, %v477
        %v645 = vmul.f32 %v461, %v447
        %v646 = vmul.f32 %v461, %v448
        %v647 = vmul.f32 %v465, %v447
        %v648 = vmul.f32 %v465, %v448
        %v649 = vmul.f32 %v469, %v447
        %v650 = vmul.f32 %v469, %v448
        %v651 = vmul.f32 %v473, %v447
        %v652 = vmul.f32 %v473, %v448
        %v653 = vadd.f32 %v637, %v645
        %v654 = vadd.f32 %v638, %v646
        %v655 = vadd.f32 %v639, %v647
        %v656 = vadd.f32 %v640, %v648
        %v657 = vadd.f32 %v641, %v649
        %v658 = vadd.f32 %v642, %v650
        %v659 = vadd.f32 %v643, %v651
        %v660 = vadd.f32 %v644, %v652
        %v661 = vmul.f32 %v535, %v476
        %v662 = vmul.f32 %v535, %v477
        %v663 = vmul.f32 %v539, %v476
        %v664 = vmul.f32 %v539, %v477
        %v665 = vmul.f32 %v543, %v476
        %v666 = vmul.f32 %v543, %v477
        %v667 = vmul.f32 %v547, %v476
        %v668 = vmul.f32 %v547, %v477
        %677 = vrot.lane.b32.xlu0 %v661, 127
        %v678 = vpop.permute.xlu0 %677
        %679 = vrot.lane.b32.xlu0 %v662, 127
        %v680 = vpop.permute.xlu0 %679
        %681 = vrot.lane.b32.xlu0 %v663, 127
        %v682 = vpop.permute.xlu0 %681
        %683 = vrot.lane.b32.xlu0 %v664, 127
        %v684 = vpop.permute.xlu0 %683
        %685 = vrot.lane.b32.xlu0 %v665, 127
        %v686 = vpop.permute.xlu0 %685
        %687 = vrot.lane.b32.xlu0 %v666, 127
        %v688 = vpop.permute.xlu0 %687
        %689 = vrot.lane.b32.xlu0 %v667, 127
        %v690 = vpop.permute.xlu0 %689
        %691 = vrot.lane.b32.xlu0 %v668, 127
        %v692 = vpop.permute.xlu0 %691
        %v693 = vsel %vm512, %v678, %v680
        %v694 = vsel %vm512, %v682, %v684
        %v695 = vsel %vm512, %v686, %v688
        %v696 = vsel %vm512, %v690, %v692
        %v705 = vadd.f32 %v653, %v693
        %v706 = vadd.f32 %v654, %v680
        %v707 = vadd.f32 %v655, %v694
        %v708 = vadd.f32 %v656, %v684
        %v709 = vadd.f32 %v657, %v695
        %v710 = vadd.f32 %v658, %v688
        %v711 = vadd.f32 %v659, %v696
        %v712 = vadd.f32 %v660, %v692
        %v713 = vadd.f32 %v705, %v604
        %v714 = vadd.f32 %v706, %v604
        %v715 = vadd.f32 %v707, %v609
        %v716 = vadd.f32 %v708, %v609
        %v717 = vadd.f32 %v709, %v614
        %v718 = vadd.f32 %v710, %v614
        %v719 = vadd.f32 %v711, %v619
        %v720 = vadd.f32 %v712, %v619
        %v721 = vmax.f32 %v713, 0.0
        %v722 = vmax.f32 %v714, 0.0
        %v723 = vmax.f32 %v715, 0.0
        %v724 = vmax.f32 %v716, 0.0
        %v725 = vmax.f32 %v717, 0.0
        %v726 = vmax.f32 %v718, 0.0
        %v727 = vmax.f32 %v719, 0.0
        %v728 = vmax.f32 %v720, 0.0
        %v729 = vlaneseq
        %v730 = vand.u32 %v729, 127
        %v731 = vadd.s32 %v730, 128
        %s732 = smul.u32 %s28, 128
        %s733 = ssub.s32 %s732, 1
        %v734 = vstv %s733
        %v735 = vadd.s32 %v734, %v730
        %v736 = vadd.s32 %v734, %v731
        %vm737 = vcmp.ge.s32.totalorder %v735, 0
        %vm738 = vcmp.ge.s32.totalorder %v736, 0
        %vm739 = vcmp.lt.s32.totalorder %v735, 320
        %vm740 = vcmp.lt.s32.totalorder %v736, 320
        %vm741 = vmand %vm737, %vm739
        %vm742 = vmand %vm738, %vm740
        %v743 = vsel %vm741, %v629, 0.0
        %v744 = vsel %vm742, %v630, 0.0
        %v745 = vsel %vm741, %v631, 0.0
        %v746 = vsel %vm742, %v632, 0.0
        %v747 = vsel %vm741, %v633, 0.0
        %v748 = vsel %vm742, %v634, 0.0
        %v749 = vsel %vm741, %v635, 0.0
        %v750 = vsel %vm742, %v636, 0.0
        %759 = vrot.lane.b32.xlu0 %v721, 127
        %v760 = vpop.permute.xlu0 %759
        %761 = vrot.lane.b32.xlu0 %v722, 127
        %v762 = vpop.permute.xlu0 %761
        %763 = vrot.lane.b32.xlu0 %v723, 127
        %v764 = vpop.permute.xlu0 %763
        %765 = vrot.lane.b32.xlu0 %v724, 127
        %v766 = vpop.permute.xlu0 %765
        %767 = vrot.lane.b32.xlu0 %v725, 127
        %v768 = vpop.permute.xlu0 %767
        %769 = vrot.lane.b32.xlu0 %v726, 127
        %v770 = vpop.permute.xlu0 %769
        %771 = vrot.lane.b32.xlu0 %v727, 127
        %v772 = vpop.permute.xlu0 %771
        %773 = vrot.lane.b32.xlu0 %v728, 127
        %v774 = vpop.permute.xlu0 %773
        %v775 = vsel %vm512, %v760, %v762
        %v776 = vsel %vm512, %v764, %v766
        %v777 = vsel %vm512, %v768, %v770
        %v778 = vsel %vm512, %v772, %v774
        %v787 = vsel %vm741, %v775, 0.0
        %v788 = vsel %vm742, %v762, 0.0
        %v789 = vsel %vm741, %v776, 0.0
        %v790 = vsel %vm742, %v766, 0.0
        %v791 = vsel %vm741, %v777, 0.0
        %v792 = vsel %vm742, %v770, 0.0
        %v793 = vsel %vm741, %v778, 0.0
        %v794 = vsel %vm742, %v774, 0.0
        %v795 = vld [vmem:[#allocation2] sm:$0xff]
        %v796 = vld [vmem:[#allocation2 + $0x8] sm:$0xff]
        %v797 = vld [vmem:[#allocation2 + $0x10] sm:$0xff]
        %v798 = vld [vmem:[#allocation2 + $0x18] sm:$0xff]
        %s799 = scalar_lea.vmem [#allocation2], 32
        %v800 = vld [vmem:[%s799] sm:$0xff]
        %v801 = vld [vmem:[%s799 + $0x8] sm:$0xff]
        %v802 = vld [vmem:[%s799 + $0x10] sm:$0xff]
        %v803 = vld [vmem:[%s799 + $0x18] sm:$0xff]
        %s804 = scalar_lea.vmem [#allocation2], 64
        %v805 = vld [vmem:[%s804] sm:$0xff]
        %v806 = vld [vmem:[%s804 + $0x8] sm:$0xff]
        %v807 = vld [vmem:[%s804 + $0x10] sm:$0xff]
        %v808 = vld [vmem:[%s804 + $0x18] sm:$0xff]
        %v809 = vld [vmem:[%s5] sm:$0xff]
        %v810 = vld [vmem:[%s5 + $0x8] sm:$0xff]
        %v811 = vld [vmem:[%s5 + $0x10] sm:$0xff]
        %v812 = vld [vmem:[%s5 + $0x18] sm:$0xff]
        %821 = vrot.lane.b32.xlu0 %v743, 127
        %v822 = vpop.permute.xlu0 %821
        %823 = vrot.lane.b32.xlu0 %v744, 127
        %v824 = vpop.permute.xlu0 %823
        %825 = vrot.lane.b32.xlu0 %v745, 127
        %v826 = vpop.permute.xlu0 %825
        %827 = vrot.lane.b32.xlu0 %v746, 127
        %v828 = vpop.permute.xlu0 %827
        %829 = vrot.lane.b32.xlu0 %v747, 127
        %v830 = vpop.permute.xlu0 %829
        %831 = vrot.lane.b32.xlu0 %v748, 127
        %v832 = vpop.permute.xlu0 %831
        %833 = vrot.lane.b32.xlu0 %v749, 127
        %v834 = vpop.permute.xlu0 %833
        %835 = vrot.lane.b32.xlu0 %v750, 127
        %v836 = vpop.permute.xlu0 %835
        %v837 = vsel %vm512, %v822, %v824
        %v838 = vsel %vm512, %v826, %v828
        %v839 = vsel %vm512, %v830, %v832
        %v840 = vsel %vm512, %v834, %v836
        %vm845 = vcmask 261120
        %v847 = vsel %vm845, %v800, 0
        %v850 = vsel %vm845, %v801, 0
        %v853 = vsel %vm845, %v802, 0
        %v856 = vsel %vm845, %v803, 0
        %858 = vmatpush.msra.mxu0 0.0
        %859 = vmatpush.msra.mxu0 0.0
        %860 = vmatpush.msra.mxu0 0.0
        %861 = vmatpush.msra.mxu0 0.0
        %862 = vmatpush.msra.mxu0 0.0
        %863 = vmatpush.msra.mxu0 0.0
        %864 = vmatpush.msra.mxu0 0.0
        %865 = vmatpush.msra.mxu0 0.0
        %866 = vmatpush.msra.mxu0 0.0
        %867 = vmatpush.msra.mxu0 0.0
        %868 = vmatpush.msra.mxu0 0.0
        %869 = vmatpush.msra.mxu0 0.0
        %870 = vmatpush.msra.mxu0 %v840
        %871 = vmatpush.msra.mxu0 %v839
        %872 = vmatpush.msra.mxu0 %v838
        %873 = vmatpush.msra.mxu0 %v837
        %874 = vmatmul.f32.gmra.mxu0 %v847
        %v875 = vpop.f32.mrf.mxu0
        %v876 = vadd.f32 0.0, %v875
        %877 = vmatmul.f32.gmra.mxu0 %v850
        %v878 = vpop.f32.mrf.mxu0
        %v879 = vadd.f32 0.0, %v878
        %880 = vmatmul.f32.gmra.mxu0 %v853
        %v881 = vpop.f32.mrf.mxu0
        %v882 = vadd.f32 0.0, %v881
        %883 = vmatmul.f32.gmra.mxu0 %v856
        %v884 = vpop.f32.mrf.mxu0
        %v885 = vadd.f32 0.0, %v884
        %886 = vdwg.mxu0
        %v888 = vsel %vm845, %v795, 0
        %v891 = vsel %vm845, %v796, 0
        %v894 = vsel %vm845, %v797, 0
        %v897 = vsel %vm845, %v798, 0
        %899 = vmatpush.msra.mxu0 0.0
        %900 = vmatpush.msra.mxu0 0.0
        %901 = vmatpush.msra.mxu0 0.0
        %902 = vmatpush.msra.mxu0 0.0
        %903 = vmatpush.msra.mxu0 0.0
        %904 = vmatpush.msra.mxu0 0.0
        %905 = vmatpush.msra.mxu0 0.0
        %906 = vmatpush.msra.mxu0 0.0
        %907 = vmatpush.msra.mxu0 0.0
        %908 = vmatpush.msra.mxu0 0.0
        %909 = vmatpush.msra.mxu0 0.0
        %910 = vmatpush.msra.mxu0 0.0
        %911 = vmatpush.msra.mxu0 %v793
        %912 = vmatpush.msra.mxu0 %v791
        %913 = vmatpush.msra.mxu0 %v789
        %914 = vmatpush.msra.mxu0 %v787
        %915 = vmatmul.f32.gmra.mxu0 %v888
        %v916 = vpop.f32.mrf.mxu0
        %v917 = vadd.f32 %v876, %v916
        %918 = vmatmul.f32.gmra.mxu0 %v891
        %v919 = vpop.f32.mrf.mxu0
        %v920 = vadd.f32 %v879, %v919
        %921 = vmatmul.f32.gmra.mxu0 %v894
        %v922 = vpop.f32.mrf.mxu0
        %v923 = vadd.f32 %v882, %v922
        %924 = vmatmul.f32.gmra.mxu0 %v897
        %v925 = vpop.f32.mrf.mxu0
        %v926 = vadd.f32 %v885, %v925
        %927 = vdwg.mxu0
        %936 = vrot.lane.b32.xlu0 %v787, 127
        %v937 = vpop.permute.xlu0 %936
        %938 = vrot.lane.b32.xlu0 %v788, 127
        %v939 = vpop.permute.xlu0 %938
        %940 = vrot.lane.b32.xlu0 %v789, 127
        %v941 = vpop.permute.xlu0 %940
        %942 = vrot.lane.b32.xlu0 %v790, 127
        %v943 = vpop.permute.xlu0 %942
        %944 = vrot.lane.b32.xlu0 %v791, 127
        %v945 = vpop.permute.xlu0 %944
        %946 = vrot.lane.b32.xlu0 %v792, 127
        %v947 = vpop.permute.xlu0 %946
        %948 = vrot.lane.b32.xlu0 %v793, 127
        %v949 = vpop.permute.xlu0 %948
        %950 = vrot.lane.b32.xlu0 %v794, 127
        %v951 = vpop.permute.xlu0 %950
        %v952 = vsel %vm512, %v937, %v939
        %v953 = vsel %vm512, %v941, %v943
        %v954 = vsel %vm512, %v945, %v947
        %v955 = vsel %vm512, %v949, %v951
        %v961 = vsel %vm845, %v805, 0
        %v964 = vsel %vm845, %v806, 0
        %v967 = vsel %vm845, %v807, 0
        %v970 = vsel %vm845, %v808, 0
        %972 = vmatpush.msra.mxu0 0.0
        %973 = vmatpush.msra.mxu0 0.0
        %974 = vmatpush.msra.mxu0 0.0
        %975 = vmatpush.msra.mxu0 0.0
        %976 = vmatpush.msra.mxu0 0.0
        %977 = vmatpush.msra.mxu0 0.0
        %978 = vmatpush.msra.mxu0 0.0
        %979 = vmatpush.msra.mxu0 0.0
        %980 = vmatpush.msra.mxu0 0.0
        %981 = vmatpush.msra.mxu0 0.0
        %982 = vmatpush.msra.mxu0 0.0
        %983 = vmatpush.msra.mxu0 0.0
        %984 = vmatpush.msra.mxu0 %v955
        %985 = vmatpush.msra.mxu0 %v954
        %986 = vmatpush.msra.mxu0 %v953
        %987 = vmatpush.msra.mxu0 %v952
        %988 = vmatmul.f32.gmra.mxu0 %v961
        %v989 = vpop.f32.mrf.mxu0
        %v990 = vadd.f32 0.0, %v989
        %991 = vmatmul.f32.gmra.mxu0 %v964
        %v992 = vpop.f32.mrf.mxu0
        %v993 = vadd.f32 0.0, %v992
        %994 = vmatmul.f32.gmra.mxu0 %v967
        %v995 = vpop.f32.mrf.mxu0
        %v996 = vadd.f32 0.0, %v995
        %997 = vmatmul.f32.gmra.mxu0 %v970
        %v998 = vpop.f32.mrf.mxu0
        %v999 = vadd.f32 0.0, %v998
        %1000 = vdwg.mxu0
        %v1001 = vadd.f32 %v917, %v990
        %v1002 = vadd.f32 %v920, %v993
        %v1003 = vadd.f32 %v923, %v996
        %v1004 = vadd.f32 %v926, %v999
        %1006 = vset.pattern.permute.xlu0 0
        %1007 = vperm.xlu0 %1006, %v809
        %v1008 = vpop.permute.xlu0 %1007
        %1011 = vset.pattern.permute.xlu0 0
        %1012 = vperm.xlu0 %1011, %v810
        %v1013 = vpop.permute.xlu0 %1012
        %1016 = vset.pattern.permute.xlu0 0
        %1017 = vperm.xlu0 %1016, %v811
        %v1018 = vpop.permute.xlu0 %1017
        %1021 = vset.pattern.permute.xlu0 0
        %1022 = vperm.xlu0 %1021, %v812
        %v1023 = vpop.permute.xlu0 %1022
        %v1025 = vadd.f32 %v1001, %v1008
        %v1026 = vadd.f32 %v1002, %v1013
        %v1027 = vadd.f32 %v1003, %v1018
        %v1028 = vadd.f32 %v1004, %v1023
        %v1029 = vmax.f32 %v1025, 0.0
        %v1030 = vmax.f32 %v1026, 0.0
        %v1031 = vmax.f32 %v1027, 0.0
        %v1032 = vmax.f32 %v1028, 0.0
        %1033 = vmatpush.msra.mxu0 0.0
        %1034 = vmatpush.msra.mxu0 0.0
        %1035 = vmatpush.msra.mxu0 0.0
        %1036 = vmatpush.msra.mxu0 0.0
        %1037 = vmatpush.msra.mxu0 0.0
        %1038 = vmatpush.msra.mxu0 0.0
        %1039 = vmatpush.msra.mxu0 0.0
        %1040 = vmatpush.msra.mxu0 0.0
        %1041 = vmatpush.msra.mxu0 0.0
        %1042 = vmatpush.msra.mxu0 0.0
        %1043 = vmatpush.msra.mxu0 0.0
        %1044 = vmatpush.msra.mxu0 0.0
        %1045 = vmatpush.msra.mxu0 %v955
        %1046 = vmatpush.msra.mxu0 %v954
        %1047 = vmatpush.msra.mxu0 %v953
        %1048 = vmatpush.msra.mxu0 %v952
        %1049 = vmatmul.f32.gmra.mxu0 %v847
        %v1050 = vpop.f32.mrf.mxu0
        %v1051 = vadd.f32 0.0, %v1050
        %1052 = vmatmul.f32.gmra.mxu0 %v850
        %v1053 = vpop.f32.mrf.mxu0
        %v1054 = vadd.f32 0.0, %v1053
        %1055 = vmatmul.f32.gmra.mxu0 %v853
        %v1056 = vpop.f32.mrf.mxu0
        %v1057 = vadd.f32 0.0, %v1056
        %1058 = vmatmul.f32.gmra.mxu0 %v856
        %v1059 = vpop.f32.mrf.mxu0
        %v1060 = vadd.f32 0.0, %v1059
        %1061 = vdwg.mxu0
        %1062 = vmatpush.msra.mxu0 0.0
        %1063 = vmatpush.msra.mxu0 0.0
        %1064 = vmatpush.msra.mxu0 0.0
        %1065 = vmatpush.msra.mxu0 0.0
        %1066 = vmatpush.msra.mxu0 0.0
        %1067 = vmatpush.msra.mxu0 0.0
        %1068 = vmatpush.msra.mxu0 0.0
        %1069 = vmatpush.msra.mxu0 0.0
        %1070 = vmatpush.msra.mxu0 0.0
        %1071 = vmatpush.msra.mxu0 0.0
        %1072 = vmatpush.msra.mxu0 0.0
        %1073 = vmatpush.msra.mxu0 0.0
        %1074 = vmatpush.msra.mxu0 %v840
        %1075 = vmatpush.msra.mxu0 %v839
        %1076 = vmatpush.msra.mxu0 %v838
        %1077 = vmatpush.msra.mxu0 %v837
        %1078 = vmatmul.f32.gmra.mxu0 %v888
        %v1079 = vpop.f32.mrf.mxu0
        %v1080 = vadd.f32 %v1051, %v1079
        %1081 = vmatmul.f32.gmra.mxu0 %v891
        %v1082 = vpop.f32.mrf.mxu0
        %v1083 = vadd.f32 %v1054, %v1082
        %1084 = vmatmul.f32.gmra.mxu0 %v894
        %v1085 = vpop.f32.mrf.mxu0
        %v1086 = vadd.f32 %v1057, %v1085
        %1087 = vmatmul.f32.gmra.mxu0 %v897
        %v1088 = vpop.f32.mrf.mxu0
        %v1089 = vadd.f32 %v1060, %v1088
        %1090 = vdwg.mxu0
        %1091 = vrot.lane.b32.xlu0 %v743, 126
        %v1092 = vpop.permute.xlu0 %1091
        %1093 = vrot.lane.b32.xlu0 %v744, 126
        %v1094 = vpop.permute.xlu0 %1093
        %1095 = vrot.lane.b32.xlu0 %v745, 126
        %v1096 = vpop.permute.xlu0 %1095
        %1097 = vrot.lane.b32.xlu0 %v746, 126
        %v1098 = vpop.permute.xlu0 %1097
        %1099 = vrot.lane.b32.xlu0 %v747, 126
        %v1100 = vpop.permute.xlu0 %1099
        %1101 = vrot.lane.b32.xlu0 %v748, 126
        %v1102 = vpop.permute.xlu0 %1101
        %1103 = vrot.lane.b32.xlu0 %v749, 126
        %v1104 = vpop.permute.xlu0 %1103
        %1105 = vrot.lane.b32.xlu0 %v750, 126
        %v1106 = vpop.permute.xlu0 %1105
        %vm1107 = vcmask 1031168
        %v1108 = vsel %vm1107, %v1092, %v1094
        %v1109 = vsel %vm1107, %v1096, %v1098
        %v1110 = vsel %vm1107, %v1100, %v1102
        %v1111 = vsel %vm1107, %v1104, %v1106
        %1116 = vmatpush.msra.mxu0 0.0
        %1117 = vmatpush.msra.mxu0 0.0
        %1118 = vmatpush.msra.mxu0 0.0
        %1119 = vmatpush.msra.mxu0 0.0
        %1120 = vmatpush.msra.mxu0 0.0
        %1121 = vmatpush.msra.mxu0 0.0
        %1122 = vmatpush.msra.mxu0 0.0
        %1123 = vmatpush.msra.mxu0 0.0
        %1124 = vmatpush.msra.mxu0 0.0
        %1125 = vmatpush.msra.mxu0 0.0
        %1126 = vmatpush.msra.mxu0 0.0
        %1127 = vmatpush.msra.mxu0 0.0
        %1128 = vmatpush.msra.mxu0 %v1111
        %1129 = vmatpush.msra.mxu0 %v1110
        %1130 = vmatpush.msra.mxu0 %v1109
        %1131 = vmatpush.msra.mxu0 %v1108
        %1132 = vmatmul.f32.gmra.mxu0 %v961
        %v1133 = vpop.f32.mrf.mxu0
        %v1134 = vadd.f32 0.0, %v1133
        %1135 = vmatmul.f32.gmra.mxu0 %v964
        %v1136 = vpop.f32.mrf.mxu0
        %v1137 = vadd.f32 0.0, %v1136
        %1138 = vmatmul.f32.gmra.mxu0 %v967
        %v1139 = vpop.f32.mrf.mxu0
        %v1140 = vadd.f32 0.0, %v1139
        %1141 = vmatmul.f32.gmra.mxu0 %v970
        %v1142 = vpop.f32.mrf.mxu0
        %v1143 = vadd.f32 0.0, %v1142
        %1144 = vdwg.mxu0
        %v1145 = vadd.f32 %v1080, %v1134
        %v1146 = vadd.f32 %v1083, %v1137
        %v1147 = vadd.f32 %v1086, %v1140
        %v1148 = vadd.f32 %v1089, %v1143
        %v1149 = vadd.f32 %v1145, %v1008
        %v1150 = vadd.f32 %v1146, %v1013
        %v1151 = vadd.f32 %v1147, %v1018
        %v1152 = vadd.f32 %v1148, %v1023
        %v1153 = vmax.f32 %v1149, 0.0
        %v1154 = vmax.f32 %v1150, 0.0
        %v1155 = vmax.f32 %v1151, 0.0
        %v1156 = vmax.f32 %v1152, 0.0
        %v1157 = vmax.f32 %v1029, %v1153
        %v1158 = vmax.f32 %v1030, %v1154
        %v1159 = vmax.f32 %v1031, %v1155
        %v1160 = vmax.f32 %v1032, %v1156
        %v1161 = vld [vmem:[%s343] sm:$0xf]
        %v1162 = vld [vmem:[%s343 + $0x4] sm:$0xf]
        %v1163 = vld [vmem:[%s343 + $0x8] sm:$0xf]
        %v1164 = vld [vmem:[%s343 + $0xc] sm:$0xf]
        %v1165 = vunpack.c.l.bf16 %v1161
        %v1166 = vunpack.c.l.bf16 %v1162
        %v1167 = vunpack.c.l.bf16 %v1163
        %v1168 = vunpack.c.l.bf16 %v1164
        %v1169 = vmul.f32 %v1165, %v1157
        %v1170 = vmul.f32 %v1166, %v1158
        %v1171 = vmul.f32 %v1167, %v1159
        %v1172 = vmul.f32 %v1168, %v1160
        %1173 = vadd.xlane.f32.xlu0 %v1169
        %v1174 = vpop.xlane.xlu0 %1173
        %1175 = vadd.xlane.f32.xlu0 %v1170
        %v1176 = vpop.xlane.xlu0 %1175
        %1177 = vadd.xlane.f32.xlu0 %v1171
        %v1178 = vpop.xlane.xlu0 %1177
        %1179 = vadd.xlane.f32.xlu0 %v1172
        %v1180 = vpop.xlane.xlu0 %1179
        %s1181 = scalar_lea.vmem %s343, 16 [#allocation5]
        %v1182 = vld [vmem:[%s1181] sm:$0xf]
        %v1183 = vld [vmem:[%s1181 + $0x4] sm:$0xf]
        %v1184 = vld [vmem:[%s1181 + $0x8] sm:$0xf]
        %v1185 = vld [vmem:[%s1181 + $0xc] sm:$0xf]
        %v1186 = vunpack.c.l.bf16 %v1182
        %v1187 = vunpack.c.l.bf16 %v1183
        %v1188 = vunpack.c.l.bf16 %v1184
        %v1189 = vunpack.c.l.bf16 %v1185
        %v1190 = vmul.f32 %v1186, %v1157
        %v1191 = vmul.f32 %v1187, %v1158
        %v1192 = vmul.f32 %v1188, %v1159
        %v1193 = vmul.f32 %v1189, %v1160
        %1194 = vadd.xlane.f32.xlu0 %v1190
        %v1195 = vpop.xlane.xlu0 %1194
        %1196 = vadd.xlane.f32.xlu0 %v1191
        %v1197 = vpop.xlane.xlu0 %1196
        %1198 = vadd.xlane.f32.xlu0 %v1192
        %v1199 = vpop.xlane.xlu0 %1198
        %1200 = vadd.xlane.f32.xlu0 %v1193
        %v1201 = vpop.xlane.xlu0 %1200
        %s1202 = scalar_lea.vmem %s343, 32 [#allocation5]
        %v1203 = vld [vmem:[%s1202] sm:$0xf]
        %v1204 = vld [vmem:[%s1202 + $0x4] sm:$0xf]
        %v1205 = vld [vmem:[%s1202 + $0x8] sm:$0xf]
        %v1206 = vld [vmem:[%s1202 + $0xc] sm:$0xf]
        %v1207 = vunpack.c.l.bf16 %v1203
        %v1208 = vunpack.c.l.bf16 %v1204
        %v1209 = vunpack.c.l.bf16 %v1205
        %v1210 = vunpack.c.l.bf16 %v1206
        %v1211 = vmul.f32 %v1207, %v1157
        %v1212 = vmul.f32 %v1208, %v1158
        %v1213 = vmul.f32 %v1209, %v1159
        %v1214 = vmul.f32 %v1210, %v1160
        %1215 = vadd.xlane.f32.xlu0 %v1211
        %v1216 = vpop.xlane.xlu0 %1215
        %1217 = vadd.xlane.f32.xlu0 %v1212
        %v1218 = vpop.xlane.xlu0 %1217
        %1219 = vadd.xlane.f32.xlu0 %v1213
        %v1220 = vpop.xlane.xlu0 %1219
        %1221 = vadd.xlane.f32.xlu0 %v1214
        %v1222 = vpop.xlane.xlu0 %1221
        %s1223 = scalar_lea.vmem %s343, 48 [#allocation5]
        %v1224 = vld [vmem:[%s1223] sm:$0xf]
        %v1225 = vld [vmem:[%s1223 + $0x4] sm:$0xf]
        %v1226 = vld [vmem:[%s1223 + $0x8] sm:$0xf]
        %v1227 = vld [vmem:[%s1223 + $0xc] sm:$0xf]
        %v1228 = vunpack.c.l.bf16 %v1224
        %v1229 = vunpack.c.l.bf16 %v1225
        %v1230 = vunpack.c.l.bf16 %v1226
        %v1231 = vunpack.c.l.bf16 %v1227
        %v1232 = vmul.f32 %v1228, %v1157
        %v1233 = vmul.f32 %v1229, %v1158
        %v1234 = vmul.f32 %v1230, %v1159
        %v1235 = vmul.f32 %v1231, %v1160
        %1236 = vadd.xlane.f32.xlu0 %v1232
        %v1237 = vpop.xlane.xlu0 %1236
        %1238 = vadd.xlane.f32.xlu0 %v1233
        %v1239 = vpop.xlane.xlu0 %1238
        %1240 = vadd.xlane.f32.xlu0 %v1234
        %v1241 = vpop.xlane.xlu0 %1240
        %1242 = vadd.xlane.f32.xlu0 %v1235
        %v1243 = vpop.xlane.xlu0 %1242
        %s1244 = scalar_lea.vmem %s343, 64 [#allocation5]
        %v1245 = vld [vmem:[%s1244] sm:$0xf]
        %v1246 = vld [vmem:[%s1244 + $0x4] sm:$0xf]
        %v1247 = vld [vmem:[%s1244 + $0x8] sm:$0xf]
        %v1248 = vld [vmem:[%s1244 + $0xc] sm:$0xf]
        %v1249 = vunpack.c.l.bf16 %v1245
        %v1250 = vunpack.c.l.bf16 %v1246
        %v1251 = vunpack.c.l.bf16 %v1247
        %v1252 = vunpack.c.l.bf16 %v1248
        %v1253 = vmul.f32 %v1249, %v1157
        %v1254 = vmul.f32 %v1250, %v1158
        %v1255 = vmul.f32 %v1251, %v1159
        %v1256 = vmul.f32 %v1252, %v1160
        %1257 = vadd.xlane.f32.xlu0 %v1253
        %v1258 = vpop.xlane.xlu0 %1257
        %1259 = vadd.xlane.f32.xlu0 %v1254
        %v1260 = vpop.xlane.xlu0 %1259
        %1261 = vadd.xlane.f32.xlu0 %v1255
        %v1262 = vpop.xlane.xlu0 %1261
        %1263 = vadd.xlane.f32.xlu0 %v1256
        %v1264 = vpop.xlane.xlu0 %1263
        %s1265 = scalar_lea.vmem %s343, 80 [#allocation5]
        %v1266 = vld [vmem:[%s1265] sm:$0xf]
        %v1267 = vld [vmem:[%s1265 + $0x4] sm:$0xf]
        %v1268 = vld [vmem:[%s1265 + $0x8] sm:$0xf]
        %v1269 = vld [vmem:[%s1265 + $0xc] sm:$0xf]
        %v1270 = vunpack.c.l.bf16 %v1266
        %v1271 = vunpack.c.l.bf16 %v1267
        %v1272 = vunpack.c.l.bf16 %v1268
        %v1273 = vunpack.c.l.bf16 %v1269
        %v1274 = vmul.f32 %v1270, %v1157
        %v1275 = vmul.f32 %v1271, %v1158
        %v1276 = vmul.f32 %v1272, %v1159
        %v1277 = vmul.f32 %v1273, %v1160
        %1278 = vadd.xlane.f32.xlu0 %v1274
        %v1279 = vpop.xlane.xlu0 %1278
        %1280 = vadd.xlane.f32.xlu0 %v1275
        %v1281 = vpop.xlane.xlu0 %1280
        %1282 = vadd.xlane.f32.xlu0 %v1276
        %v1283 = vpop.xlane.xlu0 %1282
        %1284 = vadd.xlane.f32.xlu0 %v1277
        %v1285 = vpop.xlane.xlu0 %1284
        %s1286 = scalar_lea.vmem %s343, 96 [#allocation5]
        %v1287 = vld [vmem:[%s1286] sm:$0xf]
        %v1288 = vld [vmem:[%s1286 + $0x4] sm:$0xf]
        %v1289 = vld [vmem:[%s1286 + $0x8] sm:$0xf]
        %v1290 = vld [vmem:[%s1286 + $0xc] sm:$0xf]
        %v1291 = vunpack.c.l.bf16 %v1287
        %v1292 = vunpack.c.l.bf16 %v1288
        %v1293 = vunpack.c.l.bf16 %v1289
        %v1294 = vunpack.c.l.bf16 %v1290
        %v1295 = vmul.f32 %v1291, %v1157
        %v1296 = vmul.f32 %v1292, %v1158
        %v1297 = vmul.f32 %v1293, %v1159
        %v1298 = vmul.f32 %v1294, %v1160
        %1299 = vadd.xlane.f32.xlu0 %v1295
        %v1300 = vpop.xlane.xlu0 %1299
        %1301 = vadd.xlane.f32.xlu0 %v1296
        %v1302 = vpop.xlane.xlu0 %1301
        %1303 = vadd.xlane.f32.xlu0 %v1297
        %v1304 = vpop.xlane.xlu0 %1303
        %1305 = vadd.xlane.f32.xlu0 %v1298
        %v1306 = vpop.xlane.xlu0 %1305
        %s1307 = scalar_lea.vmem %s343, 112 [#allocation5]
        %v1308 = vld [vmem:[%s1307] sm:$0xf]
        %v1309 = vld [vmem:[%s1307 + $0x4] sm:$0xf]
        %v1310 = vld [vmem:[%s1307 + $0x8] sm:$0xf]
        %v1311 = vld [vmem:[%s1307 + $0xc] sm:$0xf]
        %v1312 = vunpack.c.l.bf16 %v1308
        %v1313 = vunpack.c.l.bf16 %v1309
        %v1314 = vunpack.c.l.bf16 %v1310
        %v1315 = vunpack.c.l.bf16 %v1311
        %v1316 = vmul.f32 %v1312, %v1157
        %v1317 = vmul.f32 %v1313, %v1158
        %v1318 = vmul.f32 %v1314, %v1159
        %v1319 = vmul.f32 %v1315, %v1160
        %1320 = vadd.xlane.f32.xlu0 %v1316
        %v1321 = vpop.xlane.xlu0 %1320
        %1322 = vadd.xlane.f32.xlu0 %v1317
        %v1323 = vpop.xlane.xlu0 %1322
        %1324 = vadd.xlane.f32.xlu0 %v1318
        %v1325 = vpop.xlane.xlu0 %1324
        %1326 = vadd.xlane.f32.xlu0 %v1319
        %v1327 = vpop.xlane.xlu0 %1326
        %vm1328 = vcmask 7168
        %v1329 = vsel %vm1328, %v1174, %v1195
        %v1330 = vsel %vm1328, %v1176, %v1197
        %v1331 = vsel %vm1328, %v1178, %v1199
        %v1332 = vsel %vm1328, %v1180, %v1201
        %vm1333 = vcmask 15360
        %v1334 = vsel %vm1333, %v1329, %v1216
        %v1335 = vsel %vm1333, %v1330, %v1218
        %v1336 = vsel %vm1333, %v1331, %v1220
        %v1337 = vsel %vm1333, %v1332, %v1222
        %vm1338 = vcmask 23552
        %v1339 = vsel %vm1338, %v1334, %v1237
        %v1340 = vsel %vm1338, %v1335, %v1239
        %v1341 = vsel %vm1338, %v1336, %v1241
        %v1342 = vsel %vm1338, %v1337, %v1243
        %vm1343 = vcmask 31744
        %v1344 = vsel %vm1343, %v1339, %v1258
        %v1345 = vsel %vm1343, %v1340, %v1260
        %v1346 = vsel %vm1343, %v1341, %v1262
        %v1347 = vsel %vm1343, %v1342, %v1264
        %vm1348 = vcmask 39936
        %v1349 = vsel %vm1348, %v1344, %v1279
        %v1350 = vsel %vm1348, %v1345, %v1281
        %v1351 = vsel %vm1348, %v1346, %v1283
        %v1352 = vsel %vm1348, %v1347, %v1285
        %vm1353 = vcmask 48128
        %v1354 = vsel %vm1353, %v1349, %v1300
        %v1355 = vsel %vm1353, %v1350, %v1302
        %v1356 = vsel %vm1353, %v1351, %v1304
        %v1357 = vsel %vm1353, %v1352, %v1306
        %vm1358 = vcmask 56320
        %v1359 = vsel %vm1358, %v1354, %v1321
        %v1360 = vsel %vm1358, %v1355, %v1323
        %v1361 = vsel %vm1358, %v1356, %v1325
        %v1362 = vsel %vm1358, %v1357, %v1327
        %vm1363 = vcmask 64512
        %v1364 = vsel %vm1363, %v1359, 0.0
        %v1365 = vsel %vm1363, %v1360, 0.0
        %v1366 = vadd.f32 %v1364, %v1365
        %v1367 = vsel %vm1363, %v1361, 0.0
        %v1368 = vadd.f32 %v1366, %v1367
        %v1369 = vsel %vm1363, %v1362, 0.0
        %v1370 = vadd.f32 %v1368, %v1369
        %v1371 = vrot.slane %v1370, 4
        %v1372 = vadd.f32 %v1370, %v1371
        %v1373 = vrot.slane %v1372, 2
        %v1374 = vadd.f32 %v1372, %v1373
        %v1375 = vrot.slane %v1374, 1
        %v1376 = vadd.f32 %v1374, %v1375
        %s1377 = scalar_lea.vmem [#allocation7], %s29
        %v1378 = vld [vmem:[%s1377] sm:$0x1]
        %v1379 = vadd.f32 %v1378, %v1376
        %vm1380 = vcmask 57344
        %1381 = vst.msk [vmem:[%s1377] sm:$0x1] %vm1380, %v1379
        // Predicated region
        $region65: #{tpu_custom_call.1} parent=51 // pred_check
          %p1382 = pneg %p236
        $region66: #{tpu_custom_call.1} parent=51 // pred_check_branch
          %1384 = sbr.rel (%p1382) target = $region68
        $region67: #{tpu_custom_call.1} parent=51 // pred_region
          %1386 = vsyncadd [#allocation4], 0
          %s1388 = sshll.u32 [#allocation7], 4
          %s1389 = int_to_ptr.vmem [resolvable:$true] %s1388
          %s1390 = sshll.u32 %s8, 4
          %s1391 = int_to_ptr.hbm [resolvable:$true] %s1390
          %1393 = dma.vmem_to_hbm [thread:$0]  %s1389, 32, %s1391, [#allocation4]
        $region68: #{tpu_custom_call.1} parent=51 // pred_fallthru
          _
        // Predicated region
        $region69: #{tpu_custom_call.1} parent=51 // pred_check
          %p1394 = pneg %p236
        $region70: #{tpu_custom_call.1} parent=51 // pred_check_branch
          %1396 = sbr.rel (%p1394) target = $region72
        $region71: #{tpu_custom_call.1} parent=51 // pred_region
          %1398 = dma.done [#allocation4], 32
        $region72: #{tpu_custom_call.1} parent=51 // pred_fallthru
          _
      $region52: #{tpu_custom_call.1} parent=5 // pred_fallthru
        _
      %p1399 = scmp.le.s32.totalorder 2, %s19
      // Predicated region
      $region73: #{tpu_custom_call.1} parent=5 // pred_check
        %p1400 = pneg %p1399
      $region74: #{tpu_custom_call.1} parent=5 // pred_check_branch
        %1402 = sbr.rel (%p1400) target = $region76
      $region75: #{tpu_custom_call.1} parent=5 // pred_region
        %s1403 = ssub.s32 %s19, 2
      $region76: #{tpu_custom_call.1} parent=5 // pred_fallthru
        _
    $region6: #{tpu_custom_call.1} parent=1 // loop_footer
      %s23 = sadd.s32 1, %s19
    $region7: #{tpu_custom_call.1} parent=1 // loop_footer_branch
      %18 = sbr.rel target = $region3
    $region8: #{tpu_custom_call.1} parent=1 // loop_exit
      _
    %1404 = vsyncpa [#allocation3], 1
    %s1405 = scalar_lea.sflag [#allocation3], 1
    %1406 = vsyncpa %s1405, 1
    %1407 = vsyncpa [#allocation6], 1
    %s1408 = scalar_lea.sflag [#allocation6], 1
    %1409 = vsyncpa %s1408, 1
    %1410 = vsyncpa [#allocation4], 1
    %s1411 = scalar_lea.sflag [#allocation4], 1
    %1412 = vsyncpa %s1411, 1

</llo_original>
